<compile_context>
chip_gen: v7x
topology: tpu7x:2x2x1
jax: 0.10.0
libtpu: 0.0.40
codegen_flags: <defaults>
</compile_context>

<pallas_src>
import functools

import jax
import jax.numpy as jnp
from jax.experimental import pallas as pl
from jax.experimental.pallas import tpu as pltpu

BN_EPS = 1e-5
LANE = 128


def _round_up(x, m):
    return (x + m - 1) // m * m


# ----------------------------------------------------------------------------
# Fused post-embedding network kernel (one batch tile per grid step).
# refs = [cat_emb, numerical_x,
#         Wn, ssn,                      # numerical Linear (f32)
#         W0_cat, W0_num, ss0,          # bottom layer 0 (split over cat/num rows)
#         (W, ss) per remaining layer..., out]
# ----------------------------------------------------------------------------
def _fused_net_kernel(*refs, rest_acts, mxu_dtype):
    cat_ref, num_ref, wn_ref, ssn_ref, w0c_ref, w0n_ref, ss0_ref = refs[:7]
    o_ref = refs[-1]
    rest = refs[7:-1]
    md = mxu_dtype
    exact = jnp.dtype(md) == jnp.dtype(jnp.float32)

    # numerical Linear kept fully in f32 (tiny dot; preserves precision of raw
    # numeric features before any normalization).
    n = jnp.dot(num_ref[...], wn_ref[...], preferred_element_type=jnp.float32)
    n = n * ssn_ref[0:1, :] + ssn_ref[1:2, :]

    # bottom layer 0: emb = [cat_emb | numerical_emb] -> split matmul is exactly
    # the merged dot over the concatenated rows, without materializing the
    # (B, embed_output_dim) slab anywhere.  Folded eval-BN (+bias) + ReLU.
    h = (jnp.dot(cat_ref[...], w0c_ref[...], preferred_element_type=jnp.float32)
         + jnp.dot(n.astype(md), w0n_ref[...], preferred_element_type=jnp.float32))
    h = jnp.maximum(h * ss0_ref[0:1, :] + ss0_ref[1:2, :], 0.0)

    # remaining bottom layers + horizontally fused tower layers (unrolled).
    for li, act in enumerate(rest_acts):
        w_ref, ss_ref = rest[2 * li], rest[2 * li + 1]
        y = jnp.dot(h.astype(md), w_ref[...], preferred_element_type=jnp.float32)
        y = y * ss_ref[0:1, :] + ss_ref[1:2, :]
        if act == "relu":
            h = jnp.maximum(y, 0.0)
        else:  # "sigmoid": only the final narrow (TB, out_pad) tile.
            # exp on the EUP; approximate reciprocal (also EUP, ~free slot) on the
            # bf16 perf path, exact reciprocal on the f32 verification path.
            h = pl.reciprocal(1.0 + jnp.exp(-y), approx=not exact)
    o_ref[...] = h.astype(o_ref.dtype)


# ----------------------------------------------------------------------------
# Parameter construction (deterministic, synthetic)
# ----------------------------------------------------------------------------
def _linear_params(key, in_dim, out_dim):
    kw, kb = jax.random.split(key)
    bound = 1.0 / jnp.sqrt(in_dim)
    w = jax.random.uniform(kw, (in_dim, out_dim), jnp.float32, -bound, bound)
    b = jax.random.uniform(kb, (out_dim,), jnp.float32, -bound, bound)
    return {"w": w, "b": b}


def _bn_params(dim):
    return {
        "gamma": jnp.ones((dim,), jnp.float32),
        "beta": jnp.zeros((dim,), jnp.float32),
        "mean": jnp.zeros((dim,), jnp.float32),
        "var": jnp.ones((dim,), jnp.float32),
    }


def _mlp_params(key, in_dim, dims, output_layer):
    layers = []
    d = in_dim
    keys = jax.random.split(key, len(dims) + 1)
    for i, h in enumerate(dims):
        layers.append({"lin": _linear_params(keys[i], d, h), "bn": _bn_params(h)})
        d = h
    out = _linear_params(keys[-1], d, 1) if output_layer else None
    return {"layers": layers, "out": out}


def init_shared_bottom_params(key, categorical_field_dims, numerical_num, embed_dim,
                              bottom_mlp_dims, tower_mlp_dims, task_num):
    keys = jax.random.split(key, 3 + task_num)
    total_vocab = int(sum(categorical_field_dims))
    embed_output_dim = (len(categorical_field_dims) + 1) * embed_dim
    offsets = jnp.asarray(
        [0] + list(jnp.cumsum(jnp.asarray(categorical_field_dims[:-1])).tolist()),
        jnp.int32,
    )
    return {
        "embedding": 0.01 * jax.random.normal(keys[0], (total_vocab, embed_dim), jnp.float32),
        "offsets": offsets,
        "numerical": _linear_params(keys[1], numerical_num, embed_dim),
        "bottom": _mlp_params(keys[2], embed_output_dim, bottom_mlp_dims, output_layer=False),
        "towers": [
            _mlp_params(keys[3 + t], bottom_mlp_dims[-1], tower_mlp_dims, output_layer=True)
            for t in range(task_num)
        ],
    }


# ----------------------------------------------------------------------------
# Trace-time weight packing: BN fold, bias fold, tower fusion, lane padding.
# ----------------------------------------------------------------------------
def _fold_ss(lin, bn):
    """(2, out) f32: row0 = scale, row1 = shift (bias folded in)."""
    if bn is None:
        scale = jnp.ones_like(lin["b"])
        shift = lin["b"]
    else:
        scale = bn["gamma"] / jnp.sqrt(bn["var"] + BN_EPS)
        shift = bn["beta"] - bn["mean"] * scale + lin["b"] * scale
    return jnp.stack([scale, shift], axis=0).astype(jnp.float32)


def _block_diag(mats):
    rows = sum(m.shape[0] for m in mats)
    cols = sum(m.shape[1] for m in mats)
    out = jnp.zeros((rows, cols), mats[0].dtype)
    r = c = 0
    for m in mats:
        out = out.at[r:r + m.shape[0], c:c + m.shape[1]].set(m)
        r += m.shape[0]
        c += m.shape[1]
    return out


def _pad_rows(w, to):
    pad = to - w.shape[0]
    return jnp.pad(w, ((0, pad), (0, 0))) if pad > 0 else w


def _pad_cols(w, ss, to):
    """Zero-pad weight columns; padded ss columns get scale=1 / shift=0."""
    pad = to - w.shape[1]
    if pad > 0:
        w = jnp.pad(w, ((0, 0), (0, pad)))
        ss = jnp.concatenate(
            [jnp.pad(ss[0:1], ((0, 0), (0, pad)), constant_values=1.0),
             jnp.pad(ss[1:2], ((0, 0), (0, pad)), constant_values=0.0)], axis=0)
    return w, ss


def _build_fused_net(params, task_num, cat_feature_dim, mxu_dtype, out_pad):
    md = mxu_dtype
    towers = params["towers"]

    # numerical Linear (stays f32 in-kernel).
    wn = params["numerical"]["w"].astype(jnp.float32)
    ssn = _fold_ss(params["numerical"], None)

    # bottom layer 0, split across categorical / numerical rows, output lane-padded.
    b0 = params["bottom"]["layers"][0]
    w0 = b0["lin"]["w"]
    ss0 = _fold_ss(b0["lin"], b0["bn"])
    h0p = _round_up(w0.shape[1], LANE)
    w0, ss0 = _pad_cols(w0, ss0, h0p)
    w0c = w0[:cat_feature_dim].astype(md)
    w0n = w0[cat_feature_dim:].astype(md)

    rest_weights, rest_acts = [], []
    prev_pad = h0p

    def add_layer(w, ss, act):
        nonlocal prev_pad
        # pad input rows up to the previous (padded) activation width: padded
        # activations are exactly 0 (scale=1, shift=0, ReLU), so zero rows are exact.
        w = _pad_rows(w, prev_pad)
        wp = _round_up(w.shape[1], LANE) if act == "relu" else out_pad
        w, ss = _pad_cols(w, ss, wp)
        rest_weights.extend([w.astype(md), ss])
        rest_acts.append(act)
        prev_pad = wp

    # remaining bottom layers
    for layer in params["bottom"]["layers"][1:]:
        add_layer(layer["lin"]["w"], _fold_ss(layer["lin"], layer["bn"]), "relu")

    # tower hidden layers, horizontally fused across tasks
    n_tower_layers = len(towers[0]["layers"])
    for li in range(n_tower_layers):
        mats = [towers[t]["layers"][li]["lin"]["w"] for t in range(task_num)]
        w = jnp.concatenate(mats, axis=1) if li == 0 else _block_diag(mats)
        ss = jnp.concatenate(
            [_fold_ss(towers[t]["layers"][li]["lin"], towers[t]["layers"][li]["bn"])
             for t in range(task_num)], axis=1)
        add_layer(w, ss, "relu")

    # fused tower output layer -> narrow (., out_pad) tile (padded lanes give
    # sigmoid(0)=0.5, sliced off in the wrapper).
    w_out = _block_diag([towers[t]["out"]["w"] for t in range(task_num)])
    ss_out = jnp.concatenate([_fold_ss(towers[t]["out"], None) for t in range(task_num)],
                             axis=1)
    add_layer(w_out, ss_out, "sigmoid")

    layer_arrays = [wn, ssn, w0c, w0n, ss0] + rest_weights
    return layer_arrays, rest_acts


# ----------------------------------------------------------------------------
# Forward pass
# ----------------------------------------------------------------------------
def shared_bottom_forward(params, categorical_x, numerical_x, task_num,
                          mxu_dtype=jnp.bfloat16, tile_batch=2048):
    B, F = categorical_x.shape
    E = params["numerical"]["b"].shape[0]
    cat_feat = F * E
    num_feat = int(numerical_x.shape[1])
    # narrow output: masked vst but ~16x less writeback than a 128-lane f32 slab.
    out_pad = _round_up(max(task_num, 8), 8)

    layer_arrays, rest_acts = _build_fused_net(params, task_num, cat_feat, mxu_dtype, out_pad)

    # ---- batch-tile sizing (tightened VMEM estimate; grow to tile_batch, then
    #      shrink only if over budget; keep >= 2 grid steps for v7x megacore) ----
    io_itemsize = jnp.dtype(mxu_dtype).itemsize
    weight_bytes = sum(int(a.size) * a.dtype.itemsize for a in layer_arrays)
    max_w = max([cat_feat + E] + [int(a.shape[1]) for a in layer_arrays])
    in_row = cat_feat * io_itemsize + num_feat * 4
    out_row = out_pad * 4

    def vmem_est(tb):
        io = 2 * tb * (in_row + out_row)            # double-buffered IO tiles
        act = tb * max_w * (3 * 4 + io_itemsize)    # ~3 live f32 acts + 1 mxu-dtype temp
        return 2 * weight_bytes + io + act

    VMEM_BUDGET = 24 * 1024 * 1024                  # well inside v7x's 64 MiB physical
    Bp8 = _round_up(B, 8)
    TB = min(_round_up(tile_batch, 8), Bp8)
    while TB > 8 and vmem_est(TB) > VMEM_BUDGET:
        TB = max(8, ((TB // 2) // 8) * 8)
    if Bp8 > 8:
        # >= 2 steps so both v7x TensorCores participate; ~8 steps for pipelining
        # once the batch is large enough.
        target_steps = max(2, min(8, Bp8 // 512))
        TB = max(8, min(TB, _round_up(pl.cdiv(Bp8, target_steps), 8)))
    Bp = _round_up(B, TB)

    # ---- inputs: gather straight into the MXU dtype; pad indices, not the slab ----
    # TODO(synk): for large vocabularies move the gather in-kernel using
    # PrefetchScalarGridSpec scalar-prefetched indices + manual DMA from the HBM table.
    emb_table = params["embedding"].astype(mxu_dtype)
    idx = categorical_x.astype(jnp.int32) + params["offsets"][None, :]
    idx = jnp.pad(idx, ((0, Bp - B), (0, 0)))
    cat_p = jnp.take(emb_table, idx, axis=0).reshape(Bp, cat_feat)
    num_p = jnp.pad(numerical_x.astype(jnp.float32), ((0, Bp - B), (0, 0)))

    data_specs = [
        pl.BlockSpec((TB, cat_feat), lambda i: (i, 0)),
        pl.BlockSpec((TB, num_feat), lambda i: (i, 0)),
    ]
    weight_specs = [pl.BlockSpec(a.shape, lambda i: (0, 0)) for a in layer_arrays]
    out_spec = pl.BlockSpec((TB, out_pad), lambda i: (i, 0))

    kernel = functools.partial(_fused_net_kernel, rest_acts=tuple(rest_acts),
                               mxu_dtype=mxu_dtype)
    vmem_limit = int(min(max(int(1.5 * vmem_est(TB)), 8 << 20), 40 << 20))

    out = pl.pallas_call(
        kernel,
        out_shape=jax.ShapeDtypeStruct((Bp, out_pad), jnp.float32),
        grid=(Bp // TB,),
        in_specs=data_specs + weight_specs,
        out_specs=out_spec,
        compiler_params=pltpu.CompilerParams(
            dimension_semantics=("parallel",),
            vmem_limit_bytes=vmem_limit,
        ),
    )(cat_p, num_p, *layer_arrays)

    probs = out[:B, :task_num]
    return [probs[:, t] for t in range(task_num)]


# ----------------------------------------------------------------------------
# Plain-JAX reference (mirrors the PyTorch module in eval mode)
# ----------------------------------------------------------------------------
def _bn_fold(bn):
    scale = bn["gamma"] / jnp.sqrt(bn["var"] + BN_EPS)
    shift = bn["beta"] - bn["mean"] * scale
    return scale, shift


def _ref_forward(params, categorical_x, numerical_x, task_num):
    def lin(x, p):
        return x @ p["w"] + p["b"]

    def mlp(x, m, final_sigmoid):
        for layer in m["layers"]:
            s, t = _bn_fold(layer["bn"])
            x = jnp.maximum(lin(x, layer["lin"]) * s + t, 0.0)
        if m["out"] is not None:
            x = lin(x, m["out"])
            if final_sigmoid:
                x = jax.nn.sigmoid(x)
        return x

    idx = categorical_x.astype(jnp.int32) + params["offsets"][None, :]
    cat = jnp.take(params["embedding"], idx, axis=0)
    num = lin(numerical_x.astype(jnp.float32), params["numerical"])[:, None, :]
    emb = jnp.concatenate([cat, num], axis=1).reshape(categorical_x.shape[0], -1)
    fea = mlp(emb, params["bottom"], False)
    return [mlp(fea, params["towers"][t], True)[:, 0] for t in range(task_num)]


if __name__ == "__main__":
    categorical_field_dims = (10, 20, 30)   # 3 categorical fields
    numerical_num = 4
    embed_dim = 16
    bottom_mlp_dims = (64, 32)
    tower_mlp_dims = (32, 16)
    task_num = 2
    batch = 10                              # not a multiple of 8: exercises padding + 2-step grid

    key = jax.random.PRNGKey(0)
    kp, kc, kn = jax.random.split(key, 3)

    params = init_shared_bottom_params(
        kp, categorical_field_dims, numerical_num, embed_dim,
        bottom_mlp_dims, tower_mlp_dims, task_num,
    )

    max_dims = jnp.asarray(categorical_field_dims, jnp.int32)
    categorical_x = jax.random.randint(kc, (batch, len(categorical_field_dims)), 0, 1 << 30) % max_dims
    numerical_x = jax.random.normal(kn, (batch, numerical_num), jnp.float32)

    refs = _ref_forward(params, categorical_x, numerical_x, task_num)

    # exact-semantics check (f32 MXU inputs).  Skip when benchmarking: f32 MXU
    # matmul is ~3x slower than bf16 on v6e/v7x and is verification-only.
    run_exact_check = True
    if run_exact_check:
        outs_f32 = shared_bottom_forward(params, categorical_x, numerical_x, task_num,
                                         mxu_dtype=jnp.float32)
        outs_f32 = [jax.block_until_ready(o) for o in outs_f32]
        for o, r in zip(outs_f32, refs):
            assert o.shape == (batch,)
            assert jnp.allclose(o, r, atol=1e-4, rtol=1e-4), (o, r)

    # production path: bf16 MXU inputs, f32 accumulation / epilogue.
    outs_bf16 = shared_bottom_forward(params, categorical_x, numerical_x, task_num,
                                      mxu_dtype=jnp.bfloat16)
    outs_bf16 = [jax.block_until_ready(o) for o in outs_bf16]
    for o, r in zip(outs_bf16, refs):
        assert o.shape == (batch,)
        assert jnp.allclose(o, r, atol=3e-2, rtol=0.0), (o, r)

    print("KERNEL_OK")
</pallas_src>

<mosaic_0001>
module attributes {stable_mosaic.version = 11 : i64} {
  func.func @_fused_net_kernel(%arg0: i32, %arg1: memref<8x48xf32, #tpu.memory_space<vmem>>, %arg2: memref<8x4xf32, #tpu.memory_space<vmem>>, %arg3: memref<4x16xf32, #tpu.memory_space<vmem>>, %arg4: memref<2x16xf32, #tpu.memory_space<vmem>>, %arg5: memref<48x128xf32, #tpu.memory_space<vmem>>, %arg6: memref<16x128xf32, #tpu.memory_space<vmem>>, %arg7: memref<2x128xf32, #tpu.memory_space<vmem>>, %arg8: memref<128x128xf32, #tpu.memory_space<vmem>>, %arg9: memref<2x128xf32, #tpu.memory_space<vmem>>, %arg10: memref<128x128xf32, #tpu.memory_space<vmem>>, %arg11: memref<2x128xf32, #tpu.memory_space<vmem>>, %arg12: memref<128x128xf32, #tpu.memory_space<vmem>>, %arg13: memref<2x128xf32, #tpu.memory_space<vmem>>, %arg14: memref<128x8xf32, #tpu.memory_space<vmem>>, %arg15: memref<2x8xf32, #tpu.memory_space<vmem>>, %arg16: memref<8x8xf32, #tpu.memory_space<vmem>>) attributes {dimension_semantics = [#tpu.dimension_semantics<parallel>], iteration_bounds = array<i64: 2>, scalar_prefetch = 0 : i64, scratch_operands = 0 : i64, tpu.core_type = #tpu.core_type<tc>, window_params = [{transform_indices = @transform_0, window_bounds = array<i64: 8, 48>}, {transform_indices = @transform_1, window_bounds = array<i64: 8, 4>}, {pipeline_mode = #tpu.pipeline_mode<synchronous>, transform_indices = @transform_2, window_bounds = array<i64: 4, 16>}, {pipeline_mode = #tpu.pipeline_mode<synchronous>, transform_indices = @transform_3, window_bounds = array<i64: 2, 16>}, {pipeline_mode = #tpu.pipeline_mode<synchronous>, transform_indices = @transform_4, window_bounds = array<i64: 48, 128>}, {pipeline_mode = #tpu.pipeline_mode<synchronous>, transform_indices = @transform_5, window_bounds = array<i64: 16, 128>}, {pipeline_mode = #tpu.pipeline_mode<synchronous>, transform_indices = @transform_6, window_bounds = array<i64: 2, 128>}, {pipeline_mode = #tpu.pipeline_mode<synchronous>, transform_indices = @transform_7, window_bounds = array<i64: 128, 128>}, {pipeline_mode = #tpu.pipeline_mode<synchronous>, transform_indices = @transform_8, window_bounds = array<i64: 2, 128>}, {pipeline_mode = #tpu.pipeline_mode<synchronous>, transform_indices = @transform_9, window_bounds = array<i64: 128, 128>}, {pipeline_mode = #tpu.pipeline_mode<synchronous>, transform_indices = @transform_10, window_bounds = array<i64: 2, 128>}, {pipeline_mode = #tpu.pipeline_mode<synchronous>, transform_indices = @transform_11, window_bounds = array<i64: 128, 128>}, {pipeline_mode = #tpu.pipeline_mode<synchronous>, transform_indices = @transform_12, window_bounds = array<i64: 2, 128>}, {pipeline_mode = #tpu.pipeline_mode<synchronous>, transform_indices = @transform_13, window_bounds = array<i64: 128, 8>}, {pipeline_mode = #tpu.pipeline_mode<synchronous>, transform_indices = @transform_14, window_bounds = array<i64: 2, 8>}, {transform_indices = @transform_15, window_bounds = array<i64: 8, 8>}]} {
    %c0 = arith.constant 0 : index
    %c0_0 = arith.constant 0 : index
    %0 = vector.load %arg2[%c0, %c0_0] : memref<8x4xf32, #tpu.memory_space<vmem>>, vector<8x4xf32>
    %c0_1 = arith.constant 0 : index
    %c0_2 = arith.constant 0 : index
    %1 = vector.load %arg3[%c0_1, %c0_2] : memref<4x16xf32, #tpu.memory_space<vmem>>, vector<4x16xf32>
    %cst = arith.constant dense<0.000000e+00> : vector<8x16xf32>
    %2 = tpu.matmul %0, %1, %cst {dimension_numbers = #tpu.dot_dimension_numbers<[1], [0], [0], [1], [0, 0, 1, 1], [], []>} : vector<8x4xf32>, vector<4x16xf32>, vector<8x16xf32> -> vector<8x16xf32>
    %c0_3 = arith.constant 0 : index
    %c0_4 = arith.constant 0 : index
    %3 = vector.load %arg4[%c0_3, %c0_4] : memref<2x16xf32, #tpu.memory_space<vmem>>, vector<1x16xf32>
    %4 = vector.broadcast %3 : vector<1x16xf32> to vector<8x16xf32>
    %5 = arith.mulf %2, %4 : vector<8x16xf32>
    %c1 = arith.constant 1 : index
    %c0_5 = arith.constant 0 : index
    %6 = vector.load %arg4[%c1, %c0_5] : memref<2x16xf32, #tpu.memory_space<vmem>>, vector<1x16xf32>
    %7 = vector.broadcast %6 : vector<1x16xf32> to vector<8x16xf32>
    %8 = arith.addf %5, %7 : vector<8x16xf32>
    %c0_6 = arith.constant 0 : index
    %c0_7 = arith.constant 0 : index
    %9 = vector.load %arg1[%c0_6, %c0_7] : memref<8x48xf32, #tpu.memory_space<vmem>>, vector<8x48xf32>
    %c0_8 = arith.constant 0 : index
    %c0_9 = arith.constant 0 : index
    %10 = vector.load %arg5[%c0_8, %c0_9] : memref<48x128xf32, #tpu.memory_space<vmem>>, vector<48x128xf32>
    %cst_10 = arith.constant dense<0.000000e+00> : vector<8x128xf32>
    %11 = tpu.matmul %9, %10, %cst_10 {dimension_numbers = #tpu.dot_dimension_numbers<[1], [0], [0], [1], [0, 0, 1, 1], [], []>} : vector<8x48xf32>, vector<48x128xf32>, vector<8x128xf32> -> vector<8x128xf32>
    %c0_11 = arith.constant 0 : index
    %c0_12 = arith.constant 0 : index
    %12 = vector.load %arg6[%c0_11, %c0_12] : memref<16x128xf32, #tpu.memory_space<vmem>>, vector<16x128xf32>
    %cst_13 = arith.constant dense<0.000000e+00> : vector<8x128xf32>
    %13 = tpu.matmul %8, %12, %cst_13 {dimension_numbers = #tpu.dot_dimension_numbers<[1], [0], [0], [1], [0, 0, 1, 1], [], []>} : vector<8x16xf32>, vector<16x128xf32>, vector<8x128xf32> -> vector<8x128xf32>
    %14 = arith.addf %11, %13 : vector<8x128xf32>
    %c0_14 = arith.constant 0 : index
    %c0_15 = arith.constant 0 : index
    %15 = vector.load %arg7[%c0_14, %c0_15] : memref<2x128xf32, #tpu.memory_space<vmem>>, vector<1x128xf32>
    %16 = vector.broadcast %15 : vector<1x128xf32> to vector<8x128xf32>
    %17 = arith.mulf %14, %16 : vector<8x128xf32>
    %c1_16 = arith.constant 1 : index
    %c0_17 = arith.constant 0 : index
    %18 = vector.load %arg7[%c1_16, %c0_17] : memref<2x128xf32, #tpu.memory_space<vmem>>, vector<1x128xf32>
    %19 = vector.broadcast %18 : vector<1x128xf32> to vector<8x128xf32>
    %20 = arith.addf %17, %19 : vector<8x128xf32>
    %cst_18 = arith.constant 0.000000e+00 : f32
    %21 = vector.broadcast %cst_18 : f32 to vector<8x128xf32>
    %22 = arith.maximumf %20, %21 : vector<8x128xf32>
    %c0_19 = arith.constant 0 : index
    %c0_20 = arith.constant 0 : index
    %23 = vector.load %arg8[%c0_19, %c0_20] : memref<128x128xf32, #tpu.memory_space<vmem>>, vector<128x128xf32>
    %cst_21 = arith.constant dense<0.000000e+00> : vector<8x128xf32>
    %24 = tpu.matmul %22, %23, %cst_21 {dimension_numbers = #tpu.dot_dimension_numbers<[1], [0], [0], [1], [0, 0, 1, 1], [], []>} : vector<8x128xf32>, vector<128x128xf32>, vector<8x128xf32> -> vector<8x128xf32>
    %c0_22 = arith.constant 0 : index
    %c0_23 = arith.constant 0 : index
    %25 = vector.load %arg9[%c0_22, %c0_23] : memref<2x128xf32, #tpu.memory_space<vmem>>, vector<1x128xf32>
    %26 = vector.broadcast %25 : vector<1x128xf32> to vector<8x128xf32>
    %27 = arith.mulf %24, %26 : vector<8x128xf32>
    %c1_24 = arith.constant 1 : index
    %c0_25 = arith.constant 0 : index
    %28 = vector.load %arg9[%c1_24, %c0_25] : memref<2x128xf32, #tpu.memory_space<vmem>>, vector<1x128xf32>
    %29 = vector.broadcast %28 : vector<1x128xf32> to vector<8x128xf32>
    %30 = arith.addf %27, %29 : vector<8x128xf32>
    %cst_26 = arith.constant 0.000000e+00 : f32
    %31 = vector.broadcast %cst_26 : f32 to vector<8x128xf32>
    %32 = arith.maximumf %30, %31 : vector<8x128xf32>
    %c0_27 = arith.constant 0 : index
    %c0_28 = arith.constant 0 : index
    %33 = vector.load %arg10[%c0_27, %c0_28] : memref<128x128xf32, #tpu.memory_space<vmem>>, vector<128x128xf32>
    %cst_29 = arith.constant dense<0.000000e+00> : vector<8x128xf32>
    %34 = tpu.matmul %32, %33, %cst_29 {dimension_numbers = #tpu.dot_dimension_numbers<[1], [0], [0], [1], [0, 0, 1, 1], [], []>} : vector<8x128xf32>, vector<128x128xf32>, vector<8x128xf32> -> vector<8x128xf32>
    %c0_30 = arith.constant 0 : index
    %c0_31 = arith.constant 0 : index
    %35 = vector.load %arg11[%c0_30, %c0_31] : memref<2x128xf32, #tpu.memory_space<vmem>>, vector<1x128xf32>
    %36 = vector.broadcast %35 : vector<1x128xf32> to vector<8x128xf32>
    %37 = arith.mulf %34, %36 : vector<8x128xf32>
    %c1_32 = arith.constant 1 : index
    %c0_33 = arith.constant 0 : index
    %38 = vector.load %arg11[%c1_32, %c0_33] : memref<2x128xf32, #tpu.memory_space<vmem>>, vector<1x128xf32>
    %39 = vector.broadcast %38 : vector<1x128xf32> to vector<8x128xf32>
    %40 = arith.addf %37, %39 : vector<8x128xf32>
    %cst_34 = arith.constant 0.000000e+00 : f32
    %41 = vector.broadcast %cst_34 : f32 to vector<8x128xf32>
    %42 = arith.maximumf %40, %41 : vector<8x128xf32>
    %c0_35 = arith.constant 0 : index
    %c0_36 = arith.constant 0 : index
    %43 = vector.load %arg12[%c0_35, %c0_36] : memref<128x128xf32, #tpu.memory_space<vmem>>, vector<128x128xf32>
    %cst_37 = arith.constant dense<0.000000e+00> : vector<8x128xf32>
    %44 = tpu.matmul %42, %43, %cst_37 {dimension_numbers = #tpu.dot_dimension_numbers<[1], [0], [0], [1], [0, 0, 1, 1], [], []>} : vector<8x128xf32>, vector<128x128xf32>, vector<8x128xf32> -> vector<8x128xf32>
    %c0_38 = arith.constant 0 : index
    %c0_39 = arith.constant 0 : index
    %45 = vector.load %arg13[%c0_38, %c0_39] : memref<2x128xf32, #tpu.memory_space<vmem>>, vector<1x128xf32>
    %46 = vector.broadcast %45 : vector<1x128xf32> to vector<8x128xf32>
    %47 = arith.mulf %44, %46 : vector<8x128xf32>
    %c1_40 = arith.constant 1 : index
    %c0_41 = arith.constant 0 : index
    %48 = vector.load %arg13[%c1_40, %c0_41] : memref<2x128xf32, #tpu.memory_space<vmem>>, vector<1x128xf32>
    %49 = vector.broadcast %48 : vector<1x128xf32> to vector<8x128xf32>
    %50 = arith.addf %47, %49 : vector<8x128xf32>
    %cst_42 = arith.constant 0.000000e+00 : f32
    %51 = vector.broadcast %cst_42 : f32 to vector<8x128xf32>
    %52 = arith.maximumf %50, %51 : vector<8x128xf32>
    %c0_43 = arith.constant 0 : index
    %c0_44 = arith.constant 0 : index
    %53 = vector.load %arg14[%c0_43, %c0_44] : memref<128x8xf32, #tpu.memory_space<vmem>>, vector<128x8xf32>
    %cst_45 = arith.constant dense<0.000000e+00> : vector<8x8xf32>
    %54 = tpu.matmul %52, %53, %cst_45 {dimension_numbers = #tpu.dot_dimension_numbers<[1], [0], [0], [1], [0, 0, 1, 1], [], []>} : vector<8x128xf32>, vector<128x8xf32>, vector<8x8xf32> -> vector<8x8xf32>
    %c0_46 = arith.constant 0 : index
    %c0_47 = arith.constant 0 : index
    %55 = vector.load %arg15[%c0_46, %c0_47] : memref<2x8xf32, #tpu.memory_space<vmem>>, vector<1x8xf32>
    %56 = vector.broadcast %55 : vector<1x8xf32> to vector<8x8xf32>
    %57 = arith.mulf %54, %56 : vector<8x8xf32>
    %c1_48 = arith.constant 1 : index
    %c0_49 = arith.constant 0 : index
    %58 = vector.load %arg15[%c1_48, %c0_49] : memref<2x8xf32, #tpu.memory_space<vmem>>, vector<1x8xf32>
    %59 = vector.broadcast %58 : vector<1x8xf32> to vector<8x8xf32>
    %60 = arith.addf %57, %59 : vector<8x8xf32>
    %cst_50 = arith.constant 0.000000e+00 : f32
    %61 = vector.broadcast %cst_50 : f32 to vector<8x8xf32>
    %62 = arith.subf %61, %60 : vector<8x8xf32>
    %63 = math.exp %62 : vector<8x8xf32>
    %cst_51 = arith.constant 1.000000e+00 : f32
    %64 = vector.broadcast %cst_51 : f32 to vector<8x8xf32>
    %65 = arith.addf %64, %63 : vector<8x8xf32>
    %66 = tpu.reciprocal %65 : vector<8x8xf32> -> vector<8x8xf32>
    %c0_52 = arith.constant 0 : index
    %c0_53 = arith.constant 0 : index
    %67 = vector.load %arg16[%c0_52, %c0_53] : memref<8x8xf32, #tpu.memory_space<vmem>>, vector<8x8xf32>
    tpu.vector_store %arg16[%c0_52, %c0_53], %66 {strides = array<i32>} : memref<8x8xf32, #tpu.memory_space<vmem>>, vector<8x8xf32>,
    return
  }
  func.func @transform_0(%arg0: i32) -> (i32, i32) {
    %c0_i32 = arith.constant 0 : i32
    %c0_i32_0 = arith.constant 0 : i32
    return %arg0, %c0_i32 : i32, i32
  }
  func.func @transform_1(%arg0: i32) -> (i32, i32) {
    %c0_i32 = arith.constant 0 : i32
    %c0_i32_0 = arith.constant 0 : i32
    return %arg0, %c0_i32 : i32, i32
  }
  func.func @transform_2(%arg0: i32) -> (i32, i32) {
    %c0_i32 = arith.constant 0 : i32
    %c0_i32_0 = arith.constant 0 : i32
    %c0_i32_1 = arith.constant 0 : i32
    return %c0_i32, %c0_i32_0 : i32, i32
  }
  func.func @transform_3(%arg0: i32) -> (i32, i32) {
    %c0_i32 = arith.constant 0 : i32
    %c0_i32_0 = arith.constant 0 : i32
    %c0_i32_1 = arith.constant 0 : i32
    return %c0_i32, %c0_i32_0 : i32, i32
  }
  func.func @transform_4(%arg0: i32) -> (i32, i32) {
    %c0_i32 = arith.constant 0 : i32
    %c0_i32_0 = arith.constant 0 : i32
    %c0_i32_1 = arith.constant 0 : i32
    return %c0_i32, %c0_i32_0 : i32, i32
  }
  func.func @transform_5(%arg0: i32) -> (i32, i32) {
    %c0_i32 = arith.constant 0 : i32
    %c0_i32_0 = arith.constant 0 : i32
    %c0_i32_1 = arith.constant 0 : i32
    return %c0_i32, %c0_i32_0 : i32, i32
  }
  func.func @transform_6(%arg0: i32) -> (i32, i32) {
    %c0_i32 = arith.constant 0 : i32
    %c0_i32_0 = arith.constant 0 : i32
    %c0_i32_1 = arith.constant 0 : i32
    return %c0_i32, %c0_i32_0 : i32, i32
  }
  func.func @transform_7(%arg0: i32) -> (i32, i32) {
    %c0_i32 = arith.constant 0 : i32
    %c0_i32_0 = arith.constant 0 : i32
    %c0_i32_1 = arith.constant 0 : i32
    return %c0_i32, %c0_i32_0 : i32, i32
  }
  func.func @transform_8(%arg0: i32) -> (i32, i32) {
    %c0_i32 = arith.constant 0 : i32
    %c0_i32_0 = arith.constant 0 : i32
    %c0_i32_1 = arith.constant 0 : i32
    return %c0_i32, %c0_i32_0 : i32, i32
  }
  func.func @transform_9(%arg0: i32) -> (i32, i32) {
    %c0_i32 = arith.constant 0 : i32
    %c0_i32_0 = arith.constant 0 : i32
    %c0_i32_1 = arith.constant 0 : i32
    return %c0_i32, %c0_i32_0 : i32, i32
  }
  func.func @transform_10(%arg0: i32) -> (i32, i32) {
    %c0_i32 = arith.constant 0 : i32
    %c0_i32_0 = arith.constant 0 : i32
    %c0_i32_1 = arith.constant 0 : i32
    return %c0_i32, %c0_i32_0 : i32, i32
  }
  func.func @transform_11(%arg0: i32) -> (i32, i32) {
    %c0_i32 = arith.constant 0 : i32
    %c0_i32_0 = arith.constant 0 : i32
    %c0_i32_1 = arith.constant 0 : i32
    return %c0_i32, %c0_i32_0 : i32, i32
  }
  func.func @transform_12(%arg0: i32) -> (i32, i32) {
    %c0_i32 = arith.constant 0 : i32
    %c0_i32_0 = arith.constant 0 : i32
    %c0_i32_1 = arith.constant 0 : i32
    return %c0_i32, %c0_i32_0 : i32, i32
  }
  func.func @transform_13(%arg0: i32) -> (i32, i32) {
    %c0_i32 = arith.constant 0 : i32
    %c0_i32_0 = arith.constant 0 : i32
    %c0_i32_1 = arith.constant 0 : i32
    return %c0_i32, %c0_i32_0 : i32, i32
  }
  func.func @transform_14(%arg0: i32) -> (i32, i32) {
    %c0_i32 = arith.constant 0 : i32
    %c0_i32_0 = arith.constant 0 : i32
    %c0_i32_1 = arith.constant 0 : i32
    return %c0_i32, %c0_i32_0 : i32, i32
  }
  func.func @transform_15(%arg0: i32) -> (i32, i32) {
    %c0_i32 = arith.constant 0 : i32
    %c0_i32_0 = arith.constant 0 : i32
    return %arg0, %c0_i32 : i32, i32
  }
}

</mosaic_0001>

<llo_original>
// kernel: tpu_custom_call.1
$region0: #{tpu_custom_call.1}
  #allocation0 [shape = 'u32[]', space=smem, size = 0x4, offset = 0x4, fixed_abs, tag = 'smem constant byte address 0x4 - core index']
  #allocation1 [shape = 'u32[144,128]{1,0:T(1,128)}', space=vmem, size = 0x12000, scoped, tag = 'internal scratch']
  %s0 = inlined_call_operand.hbm [shape: f32[16,48], index: 0, kind: input, shape index: {}]
  %s1 = inlined_call_operand.vmem [shape: f32[16,4], index: 1, kind: input, shape index: {}]
  %s2 = inlined_call_operand.hbm [shape: f32[4,16], index: 2, kind: input, shape index: {}]
  %s3 = inlined_call_operand.vmem [shape: f32[2,16], index: 3, kind: input, shape index: {}]
  %s4 = inlined_call_operand.vmem [shape: f32[48,128], index: 4, kind: input, shape index: {}]
  %s5 = inlined_call_operand.hbm [shape: f32[16,128], index: 5, kind: input, shape index: {}]
  %s6 = inlined_call_operand.hbm [shape: f32[2,128], index: 6, kind: input, shape index: {}]
  %s7 = inlined_call_operand.vmem [shape: f32[128,128], index: 7, kind: input, shape index: {}]
  %s8 = inlined_call_operand.hbm [shape: f32[2,128], index: 8, kind: input, shape index: {}]
  %s9 = inlined_call_operand.hbm [shape: f32[128,128], index: 9, kind: input, shape index: {}]
  %s10 = inlined_call_operand.vmem [shape: f32[2,128], index: 10, kind: input, shape index: {}]
  %s11 = inlined_call_operand.hbm [shape: f32[128,128], index: 11, kind: input, shape index: {}]
  %s12 = inlined_call_operand.vmem [shape: f32[2,128], index: 12, kind: input, shape index: {}]
  %s13 = inlined_call_operand.vmem [shape: f32[128,8], index: 13, kind: input, shape index: {}]
  %s14 = inlined_call_operand.vmem [shape: f32[2,8], index: 14, kind: input, shape index: {}]
  %s15 = inlined_call_operand.vmem [shape: f32[16,8], index: 15, kind: output, shape index: {}]
  %s16 = sld [smem:[#allocation0]]
  $region121: #{tpu_custom_call.1} parent=0
    _
  %s18 = ssub.s32 1, %s16
  %s19 = scalar_select 0, %s18, %s16
  $region1: #{tpu_custom_call.1} parent=0
    #allocation2 [shape = 'u8[8192]{0}', space=vmem, size = 0x2000, scoped, tag = 'input window, operand 0']
    #allocation3 [shape = 's32[2]{0}', space=sflag, size = 0x8, scoped, tag = 'scoped memory for tpu_custom_call.1']
    #allocation4 [shape = 'u8[2048]{0}', space=vmem, size = 0x800, scoped, tag = 'input window, operand 2, single buffered']
    #allocation5 [shape = 's32[1]{0}', space=sflag, size = 0x4, scoped, tag = 'scoped memory for tpu_custom_call.1']
    #allocation6 [shape = 'u8[8192]{0}', space=vmem, size = 0x2000, scoped, tag = 'input window, operand 5, single buffered']
    #allocation7 [shape = 'u8[1024]{0}', space=vmem, size = 0x400, scoped, tag = 'input window, operand 6, single buffered']
    #allocation8 [shape = 's32[1]{0}', space=sflag, size = 0x4, scoped, tag = 'scoped memory for tpu_custom_call.1']
    #allocation9 [shape = 'u8[1024]{0}', space=vmem, size = 0x400, scoped, tag = 'input window, operand 8, single buffered']
    #allocation10 [shape = 'u8[65536]{0}', space=vmem, size = 0x10000, scoped, tag = 'input window, operand 9, single buffered']
    #allocation11 [shape = 's32[1]{0}', space=sflag, size = 0x4, scoped, tag = 'scoped memory for tpu_custom_call.1']
    #allocation12 [shape = 'u8[65536]{0}', space=vmem, size = 0x10000, scoped, tag = 'input window, operand 11, single buffered']
    %20 = vsyncpa [#allocation3], 0
    %s21 = scalar_lea.sflag [#allocation3], 1
    %22 = vsyncpa %s21, 0
    %23 = vsyncpa [#allocation5], 0
    %24 = vsyncpa [#allocation8], 0
    %25 = vsyncpa [#allocation11], 0
    loop: start=0, step=1, limit=4
    $region2: #{tpu_custom_call.1} parent=1 // loop_pre_header
      _
    $region3: #{tpu_custom_call.1} parent=1 // loop_header
      %s27 = sphi 0, %s31
      %p28 = scmp.ge.s32.totalorder %s27, 4
      %s37 = sphi 0, %s39
      %s40 = sphi 0, %s37
      %s41 = sphi 0, %s40
      %s57 = sphi 0, %s41
      %s63 = sphi 0, %s65
      %s66 = sphi 0, %s63
      %s67 = sphi 0, %s66
      %s83 = sphi 0, %s67
      %s87 = sphi 0, %s87
      %s89 = sphi 0, %s87
      %s90 = sphi 0, %s89
      %s104 = sphi 0, %s90
      %s108 = sphi 0, %s108
      %s110 = sphi 0, %s108
      %s111 = sphi 0, %s110
      %s125 = sphi 0, %s111
      %s129 = sphi 0, %s129
      %s131 = sphi 0, %s129
      %s132 = sphi 0, %s131
      %s146 = sphi 0, %s132
      %s150 = sphi 0, %s150
      %s152 = sphi 0, %s150
      %s153 = sphi 0, %s152
      %s167 = sphi 0, %s153
      %s171 = sphi 0, %s171
      %s173 = sphi 0, %s171
      %s174 = sphi 0, %s173
      %s188 = sphi 0, %s174
      %s192 = sphi 0, %s192
      %s194 = sphi 0, %s192
      %s195 = sphi 0, %s194
      %s209 = sphi 0, %s195
      %s213 = sphi 0, %s213
      %s215 = sphi 0, %s213
      %s216 = sphi 0, %s215
      %s230 = sphi 0, %s216
      %s234 = sphi 0, %s234
      %s236 = sphi 0, %s234
      %s237 = sphi 0, %s236
      %s251 = sphi 0, %s237
      %s255 = sphi 0, %s255
      %s257 = sphi 0, %s255
      %s258 = sphi 0, %s257
      %s272 = sphi 0, %s258
      %s276 = sphi 0, %s276
      %s278 = sphi 0, %s276
      %s279 = sphi 0, %s278
      %s293 = sphi 0, %s279
      %s297 = sphi 0, %s297
      %s299 = sphi 0, %s297
      %s300 = sphi 0, %s299
      %s314 = sphi 0, %s300
      %s318 = sphi 0, %s318
      %s320 = sphi 0, %s318
      %s321 = sphi 0, %s320
      %s335 = sphi 0, %s321
      %s339 = sphi 0, %s339
      %s341 = sphi 0, %s339
      %s342 = sphi 0, %s341
      %s356 = sphi 0, %s342
      %s362 = sphi 0, %s364
      %s365 = sphi 0, %s362
      %s366 = sphi 0, %s365
      %s382 = sphi 0, %s366
    $region4: #{tpu_custom_call.1} parent=1 // loop_header_branch
      %30 = sbr.rel (%p28) target = $region8
    $region5: #{tpu_custom_call.1} parent=1 // loop_body
      %s32 = ssub.s32 %s27, 1
      %s33 = ssub.s32 %s27, 2
      %s34 = sadd.s32 %s27, 1
      %s35 = ssub.s32 %s27, %s34
      %p36 = scmp.eq.s32.totalorder %s35, 0
      %s38 = sadd.s32 %s37, 1
      %s39 = scalar_select %p36, %s37, %s38
      %p42 = pneg %p36
      %p43 = scmp.eq.s32.totalorder %s27, 1
      %p44 = por %p42, %p43
      %p45 = scmp.ne.s32.totalorder %s37, %s40
      %p46 = scmp.eq.s32.totalorder %s27, 0
      %p47 = por %p45, %p46
      %p48 = scmp.ne.s32.totalorder %s37, %s40
      %p49 = scmp.eq.s32.totalorder %s32, 1
      %p50 = por %p48, %p49
      %p51 = scmp.ne.s32.totalorder %s40, %s41
      %p52 = scmp.eq.s32.totalorder %s32, 0
      %p53 = por %p51, %p52
      %p54 = scmp.ne.s32.totalorder %s40, %s41
      %p55 = scmp.eq.s32.totalorder %s33, 1
      %p56 = por %p54, %p55
      %p58 = scmp.ne.s32.totalorder %s41, %s57
      %p59 = scmp.eq.s32.totalorder %s33, 0
      %p60 = por %p58, %p59
      %s61 = ssub.s32 %s27, %s34
      %p62 = scmp.eq.s32.totalorder %s61, 0
      %s64 = sadd.s32 %s63, 1
      %s65 = scalar_select %p62, %s63, %s64
      %p68 = pneg %p62
      %p69 = scmp.eq.s32.totalorder %s27, 1
      %p70 = por %p68, %p69
      %p71 = scmp.ne.s32.totalorder %s63, %s66
      %p72 = scmp.eq.s32.totalorder %s27, 0
      %p73 = por %p71, %p72
      %p74 = scmp.ne.s32.totalorder %s63, %s66
      %p75 = scmp.eq.s32.totalorder %s32, 1
      %p76 = por %p74, %p75
      %p77 = scmp.ne.s32.totalorder %s66, %s67
      %p78 = scmp.eq.s32.totalorder %s32, 0
      %p79 = por %p77, %p78
      %p80 = scmp.ne.s32.totalorder %s66, %s67
      %p81 = scmp.eq.s32.totalorder %s33, 1
      %p82 = por %p80, %p81
      %p84 = scmp.ne.s32.totalorder %s67, %s83
      %p85 = scmp.eq.s32.totalorder %s33, 0
      %p86 = por %p84, %p85
      %s88 = sadd.s32 %s87, 1
      %p91 = scmp.eq.s32.totalorder %s27, 1
      %p92 = scmp.ne.s32.totalorder %s87, %s89
      %p93 = scmp.eq.s32.totalorder %s27, 0
      %p94 = por %p92, %p93
      %p95 = scmp.ne.s32.totalorder %s87, %s89
      %p96 = scmp.eq.s32.totalorder %s32, 1
      %p97 = por %p95, %p96
      %p98 = scmp.ne.s32.totalorder %s89, %s90
      %p99 = scmp.eq.s32.totalorder %s32, 0
      %p100 = por %p98, %p99
      %p101 = scmp.ne.s32.totalorder %s89, %s90
      %p102 = scmp.eq.s32.totalorder %s33, 1
      %p103 = por %p101, %p102
      %p105 = scmp.ne.s32.totalorder %s90, %s104
      %p106 = scmp.eq.s32.totalorder %s33, 0
      %p107 = por %p105, %p106
      %s109 = sadd.s32 %s108, 1
      %p112 = scmp.eq.s32.totalorder %s27, 1
      %p113 = scmp.ne.s32.totalorder %s108, %s110
      %p114 = scmp.eq.s32.totalorder %s27, 0
      %p115 = por %p113, %p114
      %p116 = scmp.ne.s32.totalorder %s108, %s110
      %p117 = scmp.eq.s32.totalorder %s32, 1
      %p118 = por %p116, %p117
      %p119 = scmp.ne.s32.totalorder %s110, %s111
      %p120 = scmp.eq.s32.totalorder %s32, 0
      %p121 = por %p119, %p120
      %p122 = scmp.ne.s32.totalorder %s110, %s111
      %p123 = scmp.eq.s32.totalorder %s33, 1
      %p124 = por %p122, %p123
      %p126 = scmp.ne.s32.totalorder %s111, %s125
      %p127 = scmp.eq.s32.totalorder %s33, 0
      %p128 = por %p126, %p127
      %s130 = sadd.s32 %s129, 1
      %p133 = scmp.eq.s32.totalorder %s27, 1
      %p134 = scmp.ne.s32.totalorder %s129, %s131
      %p135 = scmp.eq.s32.totalorder %s27, 0
      %p136 = por %p134, %p135
      %p137 = scmp.ne.s32.totalorder %s129, %s131
      %p138 = scmp.eq.s32.totalorder %s32, 1
      %p139 = por %p137, %p138
      %p140 = scmp.ne.s32.totalorder %s131, %s132
      %p141 = scmp.eq.s32.totalorder %s32, 0
      %p142 = por %p140, %p141
      %p143 = scmp.ne.s32.totalorder %s131, %s132
      %p144 = scmp.eq.s32.totalorder %s33, 1
      %p145 = por %p143, %p144
      %p147 = scmp.ne.s32.totalorder %s132, %s146
      %p148 = scmp.eq.s32.totalorder %s33, 0
      %p149 = por %p147, %p148
      %s151 = sadd.s32 %s150, 1
      %p154 = scmp.eq.s32.totalorder %s27, 1
      %p155 = scmp.ne.s32.totalorder %s150, %s152
      %p156 = scmp.eq.s32.totalorder %s27, 0
      %p157 = por %p155, %p156
      %p158 = scmp.ne.s32.totalorder %s150, %s152
      %p159 = scmp.eq.s32.totalorder %s32, 1
      %p160 = por %p158, %p159
      %p161 = scmp.ne.s32.totalorder %s152, %s153
      %p162 = scmp.eq.s32.totalorder %s32, 0
      %p163 = por %p161, %p162
      %p164 = scmp.ne.s32.totalorder %s152, %s153
      %p165 = scmp.eq.s32.totalorder %s33, 1
      %p166 = por %p164, %p165
      %p168 = scmp.ne.s32.totalorder %s153, %s167
      %p169 = scmp.eq.s32.totalorder %s33, 0
      %p170 = por %p168, %p169
      %s172 = sadd.s32 %s171, 1
      %p175 = scmp.eq.s32.totalorder %s27, 1
      %p176 = scmp.ne.s32.totalorder %s171, %s173
      %p177 = scmp.eq.s32.totalorder %s27, 0
      %p178 = por %p176, %p177
      %p179 = scmp.ne.s32.totalorder %s171, %s173
      %p180 = scmp.eq.s32.totalorder %s32, 1
      %p181 = por %p179, %p180
      %p182 = scmp.ne.s32.totalorder %s173, %s174
      %p183 = scmp.eq.s32.totalorder %s32, 0
      %p184 = por %p182, %p183
      %p185 = scmp.ne.s32.totalorder %s173, %s174
      %p186 = scmp.eq.s32.totalorder %s33, 1
      %p187 = por %p185, %p186
      %p189 = scmp.ne.s32.totalorder %s174, %s188
      %p190 = scmp.eq.s32.totalorder %s33, 0
      %p191 = por %p189, %p190
      %s193 = sadd.s32 %s192, 1
      %p196 = scmp.eq.s32.totalorder %s27, 1
      %p197 = scmp.ne.s32.totalorder %s192, %s194
      %p198 = scmp.eq.s32.totalorder %s27, 0
      %p199 = por %p197, %p198
      %p200 = scmp.ne.s32.totalorder %s192, %s194
      %p201 = scmp.eq.s32.totalorder %s32, 1
      %p202 = por %p200, %p201
      %p203 = scmp.ne.s32.totalorder %s194, %s195
      %p204 = scmp.eq.s32.totalorder %s32, 0
      %p205 = por %p203, %p204
      %p206 = scmp.ne.s32.totalorder %s194, %s195
      %p207 = scmp.eq.s32.totalorder %s33, 1
      %p208 = por %p206, %p207
      %p210 = scmp.ne.s32.totalorder %s195, %s209
      %p211 = scmp.eq.s32.totalorder %s33, 0
      %p212 = por %p210, %p211
      %s214 = sadd.s32 %s213, 1
      %p217 = scmp.eq.s32.totalorder %s27, 1
      %p218 = scmp.ne.s32.totalorder %s213, %s215
      %p219 = scmp.eq.s32.totalorder %s27, 0
      %p220 = por %p218, %p219
      %p221 = scmp.ne.s32.totalorder %s213, %s215
      %p222 = scmp.eq.s32.totalorder %s32, 1
      %p223 = por %p221, %p222
      %p224 = scmp.ne.s32.totalorder %s215, %s216
      %p225 = scmp.eq.s32.totalorder %s32, 0
      %p226 = por %p224, %p225
      %p227 = scmp.ne.s32.totalorder %s215, %s216
      %p228 = scmp.eq.s32.totalorder %s33, 1
      %p229 = por %p227, %p228
      %p231 = scmp.ne.s32.totalorder %s216, %s230
      %p232 = scmp.eq.s32.totalorder %s33, 0
      %p233 = por %p231, %p232
      %s235 = sadd.s32 %s234, 1
      %p238 = scmp.eq.s32.totalorder %s27, 1
      %p239 = scmp.ne.s32.totalorder %s234, %s236
      %p240 = scmp.eq.s32.totalorder %s27, 0
      %p241 = por %p239, %p240
      %p242 = scmp.ne.s32.totalorder %s234, %s236
      %p243 = scmp.eq.s32.totalorder %s32, 1
      %p244 = por %p242, %p243
      %p245 = scmp.ne.s32.totalorder %s236, %s237
      %p246 = scmp.eq.s32.totalorder %s32, 0
      %p247 = por %p245, %p246
      %p248 = scmp.ne.s32.totalorder %s236, %s237
      %p249 = scmp.eq.s32.totalorder %s33, 1
      %p250 = por %p248, %p249
      %p252 = scmp.ne.s32.totalorder %s237, %s251
      %p253 = scmp.eq.s32.totalorder %s33, 0
      %p254 = por %p252, %p253
      %s256 = sadd.s32 %s255, 1
      %p259 = scmp.eq.s32.totalorder %s27, 1
      %p260 = scmp.ne.s32.totalorder %s255, %s257
      %p261 = scmp.eq.s32.totalorder %s27, 0
      %p262 = por %p260, %p261
      %p263 = scmp.ne.s32.totalorder %s255, %s257
      %p264 = scmp.eq.s32.totalorder %s32, 1
      %p265 = por %p263, %p264
      %p266 = scmp.ne.s32.totalorder %s257, %s258
      %p267 = scmp.eq.s32.totalorder %s32, 0
      %p268 = por %p266, %p267
      %p269 = scmp.ne.s32.totalorder %s257, %s258
      %p270 = scmp.eq.s32.totalorder %s33, 1
      %p271 = por %p269, %p270
      %p273 = scmp.ne.s32.totalorder %s258, %s272
      %p274 = scmp.eq.s32.totalorder %s33, 0
      %p275 = por %p273, %p274
      %s277 = sadd.s32 %s276, 1
      %p280 = scmp.eq.s32.totalorder %s27, 1
      %p281 = scmp.ne.s32.totalorder %s276, %s278
      %p282 = scmp.eq.s32.totalorder %s27, 0
      %p283 = por %p281, %p282
      %p284 = scmp.ne.s32.totalorder %s276, %s278
      %p285 = scmp.eq.s32.totalorder %s32, 1
      %p286 = por %p284, %p285
      %p287 = scmp.ne.s32.totalorder %s278, %s279
      %p288 = scmp.eq.s32.totalorder %s32, 0
      %p289 = por %p287, %p288
      %p290 = scmp.ne.s32.totalorder %s278, %s279
      %p291 = scmp.eq.s32.totalorder %s33, 1
      %p292 = por %p290, %p291
      %p294 = scmp.ne.s32.totalorder %s279, %s293
      %p295 = scmp.eq.s32.totalorder %s33, 0
      %p296 = por %p294, %p295
      %s298 = sadd.s32 %s297, 1
      %p301 = scmp.eq.s32.totalorder %s27, 1
      %p302 = scmp.ne.s32.totalorder %s297, %s299
      %p303 = scmp.eq.s32.totalorder %s27, 0
      %p304 = por %p302, %p303
      %p305 = scmp.ne.s32.totalorder %s297, %s299
      %p306 = scmp.eq.s32.totalorder %s32, 1
      %p307 = por %p305, %p306
      %p308 = scmp.ne.s32.totalorder %s299, %s300
      %p309 = scmp.eq.s32.totalorder %s32, 0
      %p310 = por %p308, %p309
      %p311 = scmp.ne.s32.totalorder %s299, %s300
      %p312 = scmp.eq.s32.totalorder %s33, 1
      %p313 = por %p311, %p312
      %p315 = scmp.ne.s32.totalorder %s300, %s314
      %p316 = scmp.eq.s32.totalorder %s33, 0
      %p317 = por %p315, %p316
      %s319 = sadd.s32 %s318, 1
      %p322 = scmp.eq.s32.totalorder %s27, 1
      %p323 = scmp.ne.s32.totalorder %s318, %s320
      %p324 = scmp.eq.s32.totalorder %s27, 0
      %p325 = por %p323, %p324
      %p326 = scmp.ne.s32.totalorder %s318, %s320
      %p327 = scmp.eq.s32.totalorder %s32, 1
      %p328 = por %p326, %p327
      %p329 = scmp.ne.s32.totalorder %s320, %s321
      %p330 = scmp.eq.s32.totalorder %s32, 0
      %p331 = por %p329, %p330
      %p332 = scmp.ne.s32.totalorder %s320, %s321
      %p333 = scmp.eq.s32.totalorder %s33, 1
      %p334 = por %p332, %p333
      %p336 = scmp.ne.s32.totalorder %s321, %s335
      %p337 = scmp.eq.s32.totalorder %s33, 0
      %p338 = por %p336, %p337
      %s340 = sadd.s32 %s339, 1
      %p343 = scmp.eq.s32.totalorder %s27, 1
      %p344 = scmp.ne.s32.totalorder %s339, %s341
      %p345 = scmp.eq.s32.totalorder %s27, 0
      %p346 = por %p344, %p345
      %p347 = scmp.ne.s32.totalorder %s339, %s341
      %p348 = scmp.eq.s32.totalorder %s32, 1
      %p349 = por %p347, %p348
      %p350 = scmp.ne.s32.totalorder %s341, %s342
      %p351 = scmp.eq.s32.totalorder %s32, 0
      %p352 = por %p350, %p351
      %p353 = scmp.ne.s32.totalorder %s341, %s342
      %p354 = scmp.eq.s32.totalorder %s33, 1
      %p355 = por %p353, %p354
      %p357 = scmp.ne.s32.totalorder %s342, %s356
      %p358 = scmp.eq.s32.totalorder %s33, 0
      %p359 = por %p357, %p358
      %s360 = ssub.s32 %s27, %s34
      %p361 = scmp.eq.s32.totalorder %s360, 0
      %s363 = sadd.s32 %s362, 1
      %s364 = scalar_select %p361, %s362, %s363
      %p367 = pneg %p361
      %p368 = scmp.eq.s32.totalorder %s27, 1
      %p369 = por %p367, %p368
      %p370 = scmp.ne.s32.totalorder %s362, %s365
      %p371 = scmp.eq.s32.totalorder %s27, 0
      %p372 = por %p370, %p371
      %p373 = scmp.ne.s32.totalorder %s362, %s365
      %p374 = scmp.eq.s32.totalorder %s32, 1
      %p375 = por %p373, %p374
      %p376 = scmp.ne.s32.totalorder %s365, %s366
      %p377 = scmp.eq.s32.totalorder %s32, 0
      %p378 = por %p376, %p377
      %p379 = scmp.ne.s32.totalorder %s365, %s366
      %p380 = scmp.eq.s32.totalorder %s33, 1
      %p381 = por %p379, %p380
      %p383 = scmp.ne.s32.totalorder %s366, %s382
      %p384 = scmp.eq.s32.totalorder %s33, 0
      %p385 = por %p383, %p384
      %p386 = scmp.le.s32.totalorder 1, %s27
      %p387 = scmp.lt.s32.totalorder %s27, 3
      %p388 = pnand %p386, %p387
      %p389 = pneg %p388
      // Predicated region
      $region9: #{tpu_custom_call.1} parent=5 // pred_check
        _
      $region10: #{tpu_custom_call.1} parent=5 // pred_check_branch
        %391 = sbr.rel (%p388) target = $region12
      $region11: #{tpu_custom_call.1} parent=5 // pred_region
        %s392 = ssub.s32 %s27, 1
        // Predicated region
        $region13: #{tpu_custom_call.1} parent=11 // pred_check
          %p393 = pneg %p100
        $region14: #{tpu_custom_call.1} parent=11 // pred_check_branch
          %395 = sbr.rel (%p393) target = $region16
        $region15: #{tpu_custom_call.1} parent=11 // pred_region
          %s397 = ssub.s32 64, 64
          %398 = vsyncadd [#allocation5], %s397
          %s400 = sshll.u32 [#allocation4], 4
          %s401 = int_to_ptr.vmem [resolvable:$true] %s400
          %403 = dma.hbm_to_vmem [thread:$0]  %s2, 64, %s401, [#allocation5]
        $region16: #{tpu_custom_call.1} parent=11 // pred_fallthru
          _
        // Predicated region
        $region17: #{tpu_custom_call.1} parent=11 // pred_check
          %p404 = pneg %p121
        $region18: #{tpu_custom_call.1} parent=11 // pred_check_branch
          %406 = sbr.rel (%p404) target = $region20
        $region19: #{tpu_custom_call.1} parent=11 // pred_region
          _
        $region20: #{tpu_custom_call.1} parent=11 // pred_fallthru
          _
        // Predicated region
        $region21: #{tpu_custom_call.1} parent=11 // pred_check
          %p407 = pneg %p142
        $region22: #{tpu_custom_call.1} parent=11 // pred_check_branch
          %409 = sbr.rel (%p407) target = $region24
        $region23: #{tpu_custom_call.1} parent=11 // pred_region
          _
        $region24: #{tpu_custom_call.1} parent=11 // pred_fallthru
          _
        // Predicated region
        $region25: #{tpu_custom_call.1} parent=11 // pred_check
          %p410 = pneg %p163
        $region26: #{tpu_custom_call.1} parent=11 // pred_check_branch
          %412 = sbr.rel (%p410) target = $region28
        $region27: #{tpu_custom_call.1} parent=11 // pred_region
          %s414 = ssub.s32 256, 256
          %415 = vsyncadd [#allocation5], %s414
          %s416 = sshll.u32 [#allocation6], 4
          %s417 = int_to_ptr.vmem [resolvable:$true] %s416
          %422 = dma.hbm_to_vmem [thread:$0]  %s5, 256, %s417, [#allocation5], 128, 128, 8
        $region28: #{tpu_custom_call.1} parent=11 // pred_fallthru
          _
        // Predicated region
        $region29: #{tpu_custom_call.1} parent=11 // pred_check
          %p423 = pneg %p184
        $region30: #{tpu_custom_call.1} parent=11 // pred_check_branch
          %425 = sbr.rel (%p423) target = $region32
        $region31: #{tpu_custom_call.1} parent=11 // pred_region
          %s427 = ssub.s32 32, 32
          %428 = vsyncadd [#allocation8], %s427
          %s430 = sshll.u32 [#allocation7], 4
          %s431 = int_to_ptr.vmem [resolvable:$true] %s430
          %433 = dma.hbm_to_vmem [thread:$0]  %s6, 32, %s431, [#allocation8]
        $region32: #{tpu_custom_call.1} parent=11 // pred_fallthru
          _
        // Predicated region
        $region33: #{tpu_custom_call.1} parent=11 // pred_check
          %p434 = pneg %p205
        $region34: #{tpu_custom_call.1} parent=11 // pred_check_branch
          %436 = sbr.rel (%p434) target = $region36
        $region35: #{tpu_custom_call.1} parent=11 // pred_region
          _
        $region36: #{tpu_custom_call.1} parent=11 // pred_fallthru
          _
        // Predicated region
        $region37: #{tpu_custom_call.1} parent=11 // pred_check
          %p437 = pneg %p226
        $region38: #{tpu_custom_call.1} parent=11 // pred_check_branch
          %439 = sbr.rel (%p437) target = $region40
        $region39: #{tpu_custom_call.1} parent=11 // pred_region
          %s441 = ssub.s32 32, 32
          %442 = vsyncadd [#allocation8], %s441
          %s444 = sshll.u32 [#allocation9], 4
          %s445 = int_to_ptr.vmem [resolvable:$true] %s444
          %447 = dma.hbm_to_vmem [thread:$0]  %s8, 32, %s445, [#allocation8]
        $region40: #{tpu_custom_call.1} parent=11 // pred_fallthru
          _
        // Predicated region
        $region41: #{tpu_custom_call.1} parent=11 // pred_check
          %p448 = pneg %p247
        $region42: #{tpu_custom_call.1} parent=11 // pred_check_branch
          %450 = sbr.rel (%p448) target = $region44
        $region43: #{tpu_custom_call.1} parent=11 // pred_region
          %s452 = ssub.s32 2048, 2048
          %453 = vsyncadd [#allocation11], %s452
          %s454 = sshll.u32 [#allocation10], 4
          %s455 = int_to_ptr.vmem [resolvable:$true] %s454
          %460 = dma.hbm_to_vmem [thread:$0]  %s9, 2048, %s455, [#allocation11], 128, 128, 8
        $region44: #{tpu_custom_call.1} parent=11 // pred_fallthru
          _
        // Predicated region
        $region45: #{tpu_custom_call.1} parent=11 // pred_check
          %p461 = pneg %p268
        $region46: #{tpu_custom_call.1} parent=11 // pred_check_branch
          %463 = sbr.rel (%p461) target = $region48
        $region47: #{tpu_custom_call.1} parent=11 // pred_region
          _
        $region48: #{tpu_custom_call.1} parent=11 // pred_fallthru
          _
        // Predicated region
        $region49: #{tpu_custom_call.1} parent=11 // pred_check
          %p464 = pneg %p289
        $region50: #{tpu_custom_call.1} parent=11 // pred_check_branch
          %466 = sbr.rel (%p464) target = $region52
        $region51: #{tpu_custom_call.1} parent=11 // pred_region
          %s468 = ssub.s32 2048, 2048
          %469 = vsyncadd [#allocation11], %s468
          %s470 = sshll.u32 [#allocation12], 4
          %s471 = int_to_ptr.vmem [resolvable:$true] %s470
          %476 = dma.hbm_to_vmem [thread:$0]  %s11, 2048, %s471, [#allocation11], 128, 128, 8
        $region52: #{tpu_custom_call.1} parent=11 // pred_fallthru
          _
        // Predicated region
        $region53: #{tpu_custom_call.1} parent=11 // pred_check
          %p477 = pneg %p310
        $region54: #{tpu_custom_call.1} parent=11 // pred_check_branch
          %479 = sbr.rel (%p477) target = $region56
        $region55: #{tpu_custom_call.1} parent=11 // pred_region
          _
        $region56: #{tpu_custom_call.1} parent=11 // pred_fallthru
          _
        // Predicated region
        $region57: #{tpu_custom_call.1} parent=11 // pred_check
          %p480 = pneg %p331
        $region58: #{tpu_custom_call.1} parent=11 // pred_check_branch
          %482 = sbr.rel (%p480) target = $region60
        $region59: #{tpu_custom_call.1} parent=11 // pred_region
          _
        $region60: #{tpu_custom_call.1} parent=11 // pred_fallthru
          _
        // Predicated region
        $region61: #{tpu_custom_call.1} parent=11 // pred_check
          %p483 = pneg %p352
        $region62: #{tpu_custom_call.1} parent=11 // pred_check_branch
          %485 = sbr.rel (%p483) target = $region64
        $region63: #{tpu_custom_call.1} parent=11 // pred_region
          _
        $region64: #{tpu_custom_call.1} parent=11 // pred_fallthru
          _
      $region12: #{tpu_custom_call.1} parent=5 // pred_fallthru
        _
      %p486 = scmp.lt.s32.totalorder %s27, 2
      // Predicated region
      $region65: #{tpu_custom_call.1} parent=5 // pred_check
        %p487 = pneg %p486
      $region66: #{tpu_custom_call.1} parent=5 // pred_check_branch
        %489 = sbr.rel (%p487) target = $region68
      $region67: #{tpu_custom_call.1} parent=5 // pred_region
        // Predicated region
        $region69: #{tpu_custom_call.1} parent=67 // pred_check
          %p490 = pneg %p47
        $region70: #{tpu_custom_call.1} parent=67 // pred_check_branch
          %492 = sbr.rel (%p490) target = $region72
        $region71: #{tpu_custom_call.1} parent=67 // pred_region
          %s493 = sand.u32 %s37, 1
          %s494 = scalar_lea.sflag [#allocation3], %s493
          %s495 = sand.u32 %s37, 1
          %s496 = smul.addr %s495, 8
          %s497 = scalar_lea.vmem [#allocation2], %s496
          %s499 = ssub.s32 128, 128
          %500 = vsyncadd %s494, %s499
          %s501 = smul.addr %s27, 128
          %s502 = scalar_lea.hbm %s0, %s501
          %s504 = sshll.u32 %s497, 4
          %s505 = int_to_ptr.vmem [resolvable:$true] %s504
          %507 = dma.hbm_to_vmem [thread:$0]  %s502, 128, %s505, %s494
        $region72: #{tpu_custom_call.1} parent=67 // pred_fallthru
          _
        // Predicated region
        $region73: #{tpu_custom_call.1} parent=67 // pred_check
          %p508 = pneg %p73
        $region74: #{tpu_custom_call.1} parent=67 // pred_check_branch
          %510 = sbr.rel (%p508) target = $region76
        $region75: #{tpu_custom_call.1} parent=67 // pred_region
          %p511 = scmp.lt.s32.totalorder %s27, 1
          %s512 = scalar_select %p511, %s27, 1
          %s513 = smul.addr %s512, 8
          %s514 = scalar_lea.vmem %s1, %s513
        $region76: #{tpu_custom_call.1} parent=67 // pred_fallthru
          _
      $region68: #{tpu_custom_call.1} parent=5 // pred_fallthru
        _
      %p515 = scmp.le.s32.totalorder 1, %s27
      %p516 = scmp.lt.s32.totalorder %s27, 3
      %p517 = pnand %p515, %p516
      %p518 = pneg %p517
      // Predicated region
      $region77: #{tpu_custom_call.1} parent=5 // pred_check
        _
      $region78: #{tpu_custom_call.1} parent=5 // pred_check_branch
        %520 = sbr.rel (%p517) target = $region80
      $region79: #{tpu_custom_call.1} parent=5 // pred_region
        %s521 = ssub.s32 %s27, 1
        %s522 = sand.u32 %s40, 1
        %s523 = scalar_lea.sflag [#allocation3], %s522
        %s524 = sand.u32 %s40, 1
        %s525 = smul.addr %s524, 8
        %s526 = scalar_lea.vmem [#allocation2], %s525
        // Predicated region
        $region81: #{tpu_custom_call.1} parent=79 // pred_check
          %p527 = pneg %p53
        $region82: #{tpu_custom_call.1} parent=79 // pred_check_branch
          %529 = sbr.rel (%p527) target = $region84
        $region83: #{tpu_custom_call.1} parent=79 // pred_region
          %530 = dma.done %s523, 128
        $region84: #{tpu_custom_call.1} parent=79 // pred_fallthru
          _
        // Predicated region
        $region85: #{tpu_custom_call.1} parent=79 // pred_check
          %p531 = pneg %p100
        $region86: #{tpu_custom_call.1} parent=79 // pred_check_branch
          %533 = sbr.rel (%p531) target = $region88
        $region87: #{tpu_custom_call.1} parent=79 // pred_region
          %534 = dma.done [#allocation5], 64
        $region88: #{tpu_custom_call.1} parent=79 // pred_fallthru
          _
        // Predicated region
        $region89: #{tpu_custom_call.1} parent=79 // pred_check
          %p535 = pneg %p163
        $region90: #{tpu_custom_call.1} parent=79 // pred_check_branch
          %537 = sbr.rel (%p535) target = $region92
        $region91: #{tpu_custom_call.1} parent=79 // pred_region
          %538 = dma.done [#allocation5], 256
        $region92: #{tpu_custom_call.1} parent=79 // pred_fallthru
          _
        // Predicated region
        $region93: #{tpu_custom_call.1} parent=79 // pred_check
          %p539 = pneg %p184
        $region94: #{tpu_custom_call.1} parent=79 // pred_check_branch
          %541 = sbr.rel (%p539) target = $region96
        $region95: #{tpu_custom_call.1} parent=79 // pred_region
          %542 = dma.done [#allocation8], 32
        $region96: #{tpu_custom_call.1} parent=79 // pred_fallthru
          _
        // Predicated region
        $region97: #{tpu_custom_call.1} parent=79 // pred_check
          %p543 = pneg %p226
        $region98: #{tpu_custom_call.1} parent=79 // pred_check_branch
          %545 = sbr.rel (%p543) target = $region100
        $region99: #{tpu_custom_call.1} parent=79 // pred_region
          %546 = dma.done [#allocation8], 32
        $region100: #{tpu_custom_call.1} parent=79 // pred_fallthru
          _
        // Predicated region
        $region101: #{tpu_custom_call.1} parent=79 // pred_check
          %p547 = pneg %p247
        $region102: #{tpu_custom_call.1} parent=79 // pred_check_branch
          %549 = sbr.rel (%p547) target = $region104
        $region103: #{tpu_custom_call.1} parent=79 // pred_region
          %550 = dma.done [#allocation11], 2048
        $region104: #{tpu_custom_call.1} parent=79 // pred_fallthru
          _
        // Predicated region
        $region105: #{tpu_custom_call.1} parent=79 // pred_check
          %p551 = pneg %p289
        $region106: #{tpu_custom_call.1} parent=79 // pred_check_branch
          %553 = sbr.rel (%p551) target = $region108
        $region107: #{tpu_custom_call.1} parent=79 // pred_region
          %554 = dma.done [#allocation11], 2048
        $region108: #{tpu_custom_call.1} parent=79 // pred_fallthru
          _
        %s555 = sand.u32 %s40, 1
        %s556 = scalar_lea.sflag [#allocation3], %s555
        %s557 = sand.u32 %s40, 1
        %s558 = smul.addr %s557, 8
        %s559 = scalar_lea.vmem [#allocation2], %s558
        %p560 = pneg %p53
        %p561 = pneg %p50
        %p562 = scmp.lt.s32.totalorder %s32, 1
        %s563 = scalar_select %p562, %s32, 1
        %s564 = smul.addr %s563, 8
        %s565 = scalar_lea.vmem %s1, %s564
        %p566 = pneg %p79
        %p567 = pneg %p76
        %p568 = pneg %p100
        %p569 = pneg %p97
        %p570 = pneg %p121
        %p571 = pneg %p118
        %p572 = pneg %p142
        %p573 = pneg %p139
        %p574 = pneg %p163
        %p575 = pneg %p160
        %p576 = pneg %p184
        %p577 = pneg %p181
        %p578 = pneg %p205
        %p579 = pneg %p202
        %p580 = pneg %p226
        %p581 = pneg %p223
        %p582 = pneg %p247
        %p583 = pneg %p244
        %p584 = pneg %p268
        %p585 = pneg %p265
        %p586 = pneg %p289
        %p587 = pneg %p286
        %p588 = pneg %p310
        %p589 = pneg %p307
        %p590 = pneg %p331
        %p591 = pneg %p328
        %p592 = pneg %p352
        %p593 = pneg %p349
        %p594 = pneg %p378
        %p595 = pneg %p375
        %p596 = scmp.lt.s32.totalorder %s32, 1
        %s597 = scalar_select %p596, %s32, 1
        %s598 = smul.addr %s597, 8
        %s599 = scalar_lea.vmem %s15, %s598
        %p600 = scmp.lt.s32.totalorder %s32, 1
        %s601 = scalar_select %p600, %s32, 1
        %s602 = smul.addr %s601, 8
        %s603 = scalar_lea.vmem %s1, %s602
        %p604 = scmp.lt.s32.totalorder %s32, 1
        %s605 = scalar_select %p604, %s32, 1
        %s606 = smul.addr %s605, 8
        %s607 = scalar_lea.vmem %s15, %s606
        %v608 = vld [vmem:[%s603] sm:$0xff]
        %v609 = vld [vmem:[#allocation4] sm:$0xf]
        %vm610 = vcmask 31744
        %v612 = vsel %vm610, %v608, 0
        %vm614 = vcmask 1043456
        %v616 = vsel %vm614, %v609, 0
        %618 = vmatprep.subr.mxu0 0.0
        %619 = vmatpush1.msra.mxu0 %v616
        %620 = vmatprep.subr.mxu0 0.0
        %621 = vmatpush1.msra.mxu0 0.0
        %622 = vmatprep.subr.mxu0 0.0
        %623 = vmatpush1.msra.mxu0 0.0
        %624 = vmatprep.subr.mxu0 0.0
        %625 = vmatpush1.msra.mxu0 0.0
        %626 = vmatprep.subr.mxu0 0.0
        %627 = vmatpush1.msra.mxu0 0.0
        %628 = vmatprep.subr.mxu0 0.0
        %629 = vmatpush1.msra.mxu0 0.0
        %630 = vmatprep.subr.mxu0 0.0
        %631 = vmatpush1.msra.mxu0 0.0
        %632 = vmatprep.subr.mxu0 0.0
        %633 = vmatpush1.msra.mxu0 0.0
        %634 = vmatprep.subr.mxu0 0.0
        %635 = vmatpush1.msra.mxu0 0.0
        %636 = vmatprep.subr.mxu0 0.0
        %637 = vmatpush1.msra.mxu0 0.0
        %638 = vmatprep.subr.mxu0 0.0
        %639 = vmatpush1.msra.mxu0 0.0
        %640 = vmatprep.subr.mxu0 0.0
        %641 = vmatpush1.msra.mxu0 0.0
        %642 = vmatprep.subr.mxu0 0.0
        %643 = vmatpush1.msra.mxu0 0.0
        %644 = vmatprep.subr.mxu0 0.0
        %645 = vmatpush1.msra.mxu0 0.0
        %646 = vmatprep.subr.mxu0 0.0
        %647 = vmatpush1.msra.mxu0 0.0
        %648 = vmatprep.subr.mxu0 0.0
        %649 = vmatpush1.msra.mxu0 0.0
        %650 = vmatprep.subr.mxu0 0.0
        %651 = vmatpush1.msra.mxu0 0.0
        %652 = vmatprep.subr.mxu0 0.0
        %653 = vmatpush1.msra.mxu0 0.0
        %654 = vmatprep.subr.mxu0 0.0
        %655 = vmatpush1.msra.mxu0 0.0
        %656 = vmatprep.subr.mxu0 0.0
        %657 = vmatpush1.msra.mxu0 0.0
        %658 = vmatprep.subr.mxu0 0.0
        %659 = vmatpush1.msra.mxu0 0.0
        %660 = vmatprep.subr.mxu0 0.0
        %661 = vmatpush1.msra.mxu0 0.0
        %662 = vmatprep.subr.mxu0 0.0
        %663 = vmatpush1.msra.mxu0 0.0
        %664 = vmatprep.subr.mxu0 0.0
        %665 = vmatpush1.msra.mxu0 0.0
        %666 = vmatprep.subr.mxu0 0.0
        %667 = vmatpush1.msra.mxu0 0.0
        %668 = vmatprep.subr.mxu0 0.0
        %669 = vmatpush1.msra.mxu0 0.0
        %670 = vmatprep.subr.mxu0 0.0
        %671 = vmatpush1.msra.mxu0 0.0
        %672 = vmatprep.subr.mxu0 0.0
        %673 = vmatpush1.msra.mxu0 0.0
        %674 = vmatprep.subr.mxu0 0.0
        %675 = vmatpush1.msra.mxu0 0.0
        %676 = vmatprep.subr.mxu0 0.0
        %677 = vmatpush1.msra.mxu0 0.0
        %678 = vmatprep.subr.mxu0 0.0
        %679 = vmatpush1.msra.mxu0 0.0
        %680 = vmatprep.subr.mxu0 0.0
        %681 = vmatpush1.msra.mxu0 0.0
        %682 = vmatprep.mubr.f32.mxu0 0.0
        %683 = vmatmul.mubr.f32.gmra.mrb[0].mxu0 %v612
        %v684 = vpop.f32.mrb[0].mxu0
        %v685 = vadd.f32 0.0, %v684
        %v686 = vpop.f32.mrb[0].mxu0
        %687 = vdwg.mxu0
        %v688 = vld [vmem:[%s3] sm:$0x1]
        %v689 = vlaneseq
        %v690 = vshrl.u32 %v689, 7
        %v691 = vsub.s32 0, %v690
        %v692 = vrot.slane %v688, %v691
        %v693 = vmul.f32 %v685, %v692
        %v694 = vld [vmem:[%s3 + $0x1] sm:$0x1]
        %v695 = vlaneseq
        %v696 = vshrl.u32 %v695, 7
        %v697 = vsub.s32 0, %v696
        %v698 = vrot.slane %v694, %v697
        %v699 = vadd.f32 %v693, %v698
        %v700 = vld [vmem:[%s526] sm:$0xff]
        %v701 = vld [vmem:[%s4] sm:$0xff]
        %v702 = vld [vmem:[%s4 + $0x8] sm:$0xff]
        %v703 = vld [vmem:[%s4 + $0x10] sm:$0xff]
        %v704 = vld [vmem:[%s4 + $0x18] sm:$0xff]
        %v705 = vld [vmem:[%s4 + $0x20] sm:$0xff]
        %v706 = vld [vmem:[%s4 + $0x28] sm:$0xff]
        %v707 = vld [vmem:[#allocation6] sm:$0xff]
        %v708 = vld [vmem:[#allocation6 + $0x8] sm:$0xff]
        %vm709 = vcmask 130048
        %v711 = vsel %vm709, %v699, 0
        %713 = vmatprep.subr.mxu0 0.0
        %714 = vmatpush1.msra.mxu0 %v707
        %715 = vmatprep.subr.mxu0 0.0
        %716 = vmatpush1.msra.mxu0 %v708
        %717 = vmatprep.subr.mxu0 0.0
        %718 = vmatpush1.msra.mxu0 0.0
        %719 = vmatprep.subr.mxu0 0.0
        %720 = vmatpush1.msra.mxu0 0.0
        %721 = vmatprep.subr.mxu0 0.0
        %722 = vmatpush1.msra.mxu0 0.0
        %723 = vmatprep.subr.mxu0 0.0
        %724 = vmatpush1.msra.mxu0 0.0
        %725 = vmatprep.subr.mxu0 0.0
        %726 = vmatpush1.msra.mxu0 0.0
        %727 = vmatprep.subr.mxu0 0.0
        %728 = vmatpush1.msra.mxu0 0.0
        %729 = vmatprep.subr.mxu0 0.0
        %730 = vmatpush1.msra.mxu0 0.0
        %731 = vmatprep.subr.mxu0 0.0
        %732 = vmatpush1.msra.mxu0 0.0
        %733 = vmatprep.subr.mxu0 0.0
        %734 = vmatpush1.msra.mxu0 0.0
        %735 = vmatprep.subr.mxu0 0.0
        %736 = vmatpush1.msra.mxu0 0.0
        %737 = vmatprep.subr.mxu0 0.0
        %738 = vmatpush1.msra.mxu0 0.0
        %739 = vmatprep.subr.mxu0 0.0
        %740 = vmatpush1.msra.mxu0 0.0
        %741 = vmatprep.subr.mxu0 0.0
        %742 = vmatpush1.msra.mxu0 0.0
        %743 = vmatprep.subr.mxu0 0.0
        %744 = vmatpush1.msra.mxu0 0.0
        %745 = vmatprep.subr.mxu0 0.0
        %746 = vmatpush1.msra.mxu0 0.0
        %747 = vmatprep.subr.mxu0 0.0
        %748 = vmatpush1.msra.mxu0 0.0
        %749 = vmatprep.subr.mxu0 0.0
        %750 = vmatpush1.msra.mxu0 0.0
        %751 = vmatprep.subr.mxu0 0.0
        %752 = vmatpush1.msra.mxu0 0.0
        %753 = vmatprep.subr.mxu0 0.0
        %754 = vmatpush1.msra.mxu0 0.0
        %755 = vmatprep.subr.mxu0 0.0
        %756 = vmatpush1.msra.mxu0 0.0
        %757 = vmatprep.subr.mxu0 0.0
        %758 = vmatpush1.msra.mxu0 0.0
        %759 = vmatprep.subr.mxu0 0.0
        %760 = vmatpush1.msra.mxu0 0.0
        %761 = vmatprep.subr.mxu0 0.0
        %762 = vmatpush1.msra.mxu0 0.0
        %763 = vmatprep.subr.mxu0 0.0
        %764 = vmatpush1.msra.mxu0 0.0
        %765 = vmatprep.subr.mxu0 0.0
        %766 = vmatpush1.msra.mxu0 0.0
        %767 = vmatprep.subr.mxu0 0.0
        %768 = vmatpush1.msra.mxu0 0.0
        %769 = vmatprep.subr.mxu0 0.0
        %770 = vmatpush1.msra.mxu0 0.0
        %771 = vmatprep.subr.mxu0 0.0
        %772 = vmatpush1.msra.mxu0 0.0
        %773 = vmatprep.subr.mxu0 0.0
        %774 = vmatpush1.msra.mxu0 0.0
        %775 = vmatprep.subr.mxu0 0.0
        %776 = vmatpush1.msra.mxu0 0.0
        %777 = vmatprep.mubr.f32.mxu0 0.0
        %778 = vmatmul.mubr.f32.gmra.mrb[0].mxu0 %v711
        %v779 = vpop.f32.mrb[0].mxu0
        %v780 = vadd.f32 0.0, %v779
        %v781 = vpop.f32.mrb[0].mxu0
        %782 = vdwg.mxu0
        %vm783 = vcmask 392192
        %v785 = vsel %vm783, %v700, 0
        %787 = vmatprep.subr.mxu0 0.0
        %788 = vmatpush1.msra.mxu0 %v701
        %789 = vmatprep.subr.mxu0 0.0
        %790 = vmatpush1.msra.mxu0 %v702
        %791 = vmatprep.subr.mxu0 0.0
        %792 = vmatpush1.msra.mxu0 %v703
        %793 = vmatprep.subr.mxu0 0.0
        %794 = vmatpush1.msra.mxu0 %v704
        %795 = vmatprep.subr.mxu0 0.0
        %796 = vmatpush1.msra.mxu0 %v705
        %797 = vmatprep.subr.mxu0 0.0
        %798 = vmatpush1.msra.mxu0 %v706
        %799 = vmatprep.subr.mxu0 0.0
        %800 = vmatpush1.msra.mxu0 0.0
        %801 = vmatprep.subr.mxu0 0.0
        %802 = vmatpush1.msra.mxu0 0.0
        %803 = vmatprep.subr.mxu0 0.0
        %804 = vmatpush1.msra.mxu0 0.0
        %805 = vmatprep.subr.mxu0 0.0
        %806 = vmatpush1.msra.mxu0 0.0
        %807 = vmatprep.subr.mxu0 0.0
        %808 = vmatpush1.msra.mxu0 0.0
        %809 = vmatprep.subr.mxu0 0.0
        %810 = vmatpush1.msra.mxu0 0.0
        %811 = vmatprep.subr.mxu0 0.0
        %812 = vmatpush1.msra.mxu0 0.0
        %813 = vmatprep.subr.mxu0 0.0
        %814 = vmatpush1.msra.mxu0 0.0
        %815 = vmatprep.subr.mxu0 0.0
        %816 = vmatpush1.msra.mxu0 0.0
        %817 = vmatprep.subr.mxu0 0.0
        %818 = vmatpush1.msra.mxu0 0.0
        %819 = vmatprep.subr.mxu0 0.0
        %820 = vmatpush1.msra.mxu0 0.0
        %821 = vmatprep.subr.mxu0 0.0
        %822 = vmatpush1.msra.mxu0 0.0
        %823 = vmatprep.subr.mxu0 0.0
        %824 = vmatpush1.msra.mxu0 0.0
        %825 = vmatprep.subr.mxu0 0.0
        %826 = vmatpush1.msra.mxu0 0.0
        %827 = vmatprep.subr.mxu0 0.0
        %828 = vmatpush1.msra.mxu0 0.0
        %829 = vmatprep.subr.mxu0 0.0
        %830 = vmatpush1.msra.mxu0 0.0
        %831 = vmatprep.subr.mxu0 0.0
        %832 = vmatpush1.msra.mxu0 0.0
        %833 = vmatprep.subr.mxu0 0.0
        %834 = vmatpush1.msra.mxu0 0.0
        %835 = vmatprep.subr.mxu0 0.0
        %836 = vmatpush1.msra.mxu0 0.0
        %837 = vmatprep.subr.mxu0 0.0
        %838 = vmatpush1.msra.mxu0 0.0
        %839 = vmatprep.subr.mxu0 0.0
        %840 = vmatpush1.msra.mxu0 0.0
        %841 = vmatprep.subr.mxu0 0.0
        %842 = vmatpush1.msra.mxu0 0.0
        %843 = vmatprep.subr.mxu0 0.0
        %844 = vmatpush1.msra.mxu0 0.0
        %845 = vmatprep.subr.mxu0 0.0
        %846 = vmatpush1.msra.mxu0 0.0
        %847 = vmatprep.subr.mxu0 0.0
        %848 = vmatpush1.msra.mxu0 0.0
        %849 = vmatprep.subr.mxu0 0.0
        %850 = vmatpush1.msra.mxu0 0.0
        %851 = vmatprep.mubr.f32.mxu0 0.0
        %852 = vmatmul.mubr.f32.gmra.mrb[0].mxu0 %v785
        %v853 = vpop.f32.mrb[0].mxu0
        %v854 = vadd.f32 %v780, %v853
        %v855 = vpop.f32.mrb[0].mxu0
        %856 = vdwg.mxu0
        %v857 = vld [vmem:[#allocation7] sm:$0x1]
        %v858 = vlaneseq
        %v859 = vshrl.u32 %v858, 7
        %v860 = vsub.s32 0, %v859
        %v861 = vrot.slane %v857, %v860
        %v862 = vmul.f32 %v854, %v861
        %v863 = vld [vmem:[#allocation7 + $0x1] sm:$0x1]
        %v864 = vlaneseq
        %v865 = vshrl.u32 %v864, 7
        %v866 = vsub.s32 0, %v865
        %v867 = vrot.slane %v863, %v866
        %v868 = vadd.f32 %v862, %v867
        %v869 = vmax.f32 %v868, 0.0
        %v870 = vld [vmem:[%s7] sm:$0xff]
        %v871 = vld [vmem:[%s7 + $0x8] sm:$0xff]
        %v872 = vld [vmem:[%s7 + $0x10] sm:$0xff]
        %v873 = vld [vmem:[%s7 + $0x18] sm:$0xff]
        %v874 = vld [vmem:[%s7 + $0x20] sm:$0xff]
        %v875 = vld [vmem:[%s7 + $0x28] sm:$0xff]
        %v876 = vld [vmem:[%s7 + $0x30] sm:$0xff]
        %v877 = vld [vmem:[%s7 + $0x38] sm:$0xff]
        %v878 = vld [vmem:[%s7 + $0x40] sm:$0xff]
        %v879 = vld [vmem:[%s7 + $0x48] sm:$0xff]
        %v880 = vld [vmem:[%s7 + $0x50] sm:$0xff]
        %v881 = vld [vmem:[%s7 + $0x58] sm:$0xff]
        %v882 = vld [vmem:[%s7 + $0x60] sm:$0xff]
        %v883 = vld [vmem:[%s7 + $0x68] sm:$0xff]
        %v884 = vld [vmem:[%s7 + $0x70] sm:$0xff]
        %v885 = vld [vmem:[%s7 + $0x78] sm:$0xff]
        %886 = vmatprep.subr.mxu0 0.0
        %887 = vmatpush1.msra.mxu0 %v870
        %888 = vmatprep.subr.mxu0 0.0
        %889 = vmatpush1.msra.mxu0 %v871
        %890 = vmatprep.subr.mxu0 0.0
        %891 = vmatpush1.msra.mxu0 %v872
        %892 = vmatprep.subr.mxu0 0.0
        %893 = vmatpush1.msra.mxu0 %v873
        %894 = vmatprep.subr.mxu0 0.0
        %895 = vmatpush1.msra.mxu0 %v874
        %896 = vmatprep.subr.mxu0 0.0
        %897 = vmatpush1.msra.mxu0 %v875
        %898 = vmatprep.subr.mxu0 0.0
        %899 = vmatpush1.msra.mxu0 %v876
        %900 = vmatprep.subr.mxu0 0.0
        %901 = vmatpush1.msra.mxu0 %v877
        %902 = vmatprep.subr.mxu0 0.0
        %903 = vmatpush1.msra.mxu0 %v878
        %904 = vmatprep.subr.mxu0 0.0
        %905 = vmatpush1.msra.mxu0 %v879
        %906 = vmatprep.subr.mxu0 0.0
        %907 = vmatpush1.msra.mxu0 %v880
        %908 = vmatprep.subr.mxu0 0.0
        %909 = vmatpush1.msra.mxu0 %v881
        %910 = vmatprep.subr.mxu0 0.0
        %911 = vmatpush1.msra.mxu0 %v882
        %912 = vmatprep.subr.mxu0 0.0
        %913 = vmatpush1.msra.mxu0 %v883
        %914 = vmatprep.subr.mxu0 0.0
        %915 = vmatpush1.msra.mxu0 %v884
        %916 = vmatprep.subr.mxu0 0.0
        %917 = vmatpush1.msra.mxu0 %v885
        %918 = vmatprep.subr.mxu0 0.0
        %919 = vmatpush1.msra.mxu0 0.0
        %920 = vmatprep.subr.mxu0 0.0
        %921 = vmatpush1.msra.mxu0 0.0
        %922 = vmatprep.subr.mxu0 0.0
        %923 = vmatpush1.msra.mxu0 0.0
        %924 = vmatprep.subr.mxu0 0.0
        %925 = vmatpush1.msra.mxu0 0.0
        %926 = vmatprep.subr.mxu0 0.0
        %927 = vmatpush1.msra.mxu0 0.0
        %928 = vmatprep.subr.mxu0 0.0
        %929 = vmatpush1.msra.mxu0 0.0
        %930 = vmatprep.subr.mxu0 0.0
        %931 = vmatpush1.msra.mxu0 0.0
        %932 = vmatprep.subr.mxu0 0.0
        %933 = vmatpush1.msra.mxu0 0.0
        %934 = vmatprep.subr.mxu0 0.0
        %935 = vmatpush1.msra.mxu0 0.0
        %936 = vmatprep.subr.mxu0 0.0
        %937 = vmatpush1.msra.mxu0 0.0
        %938 = vmatprep.subr.mxu0 0.0
        %939 = vmatpush1.msra.mxu0 0.0
        %940 = vmatprep.subr.mxu0 0.0
        %941 = vmatpush1.msra.mxu0 0.0
        %942 = vmatprep.subr.mxu0 0.0
        %943 = vmatpush1.msra.mxu0 0.0
        %944 = vmatprep.subr.mxu0 0.0
        %945 = vmatpush1.msra.mxu0 0.0
        %946 = vmatprep.subr.mxu0 0.0
        %947 = vmatpush1.msra.mxu0 0.0
        %948 = vmatprep.subr.mxu0 0.0
        %949 = vmatpush1.msra.mxu0 0.0
        %950 = vmatprep.mubr.f32.mxu0 0.0
        %951 = vmatmul.mubr.f32.gmra.mrb[0].mxu0 %v869
        %v952 = vpop.f32.mrb[0].mxu0
        %v953 = vadd.f32 0.0, %v952
        %v954 = vpop.f32.mrb[0].mxu0
        %955 = vdwg.mxu0
        %v956 = vld [vmem:[#allocation9] sm:$0x1]
        %v957 = vlaneseq
        %v958 = vshrl.u32 %v957, 7
        %v959 = vsub.s32 0, %v958
        %v960 = vrot.slane %v956, %v959
        %v961 = vmul.f32 %v953, %v960
        %v962 = vld [vmem:[#allocation9 + $0x1] sm:$0x1]
        %v963 = vlaneseq
        %v964 = vshrl.u32 %v963, 7
        %v965 = vsub.s32 0, %v964
        %v966 = vrot.slane %v962, %v965
        %v967 = vadd.f32 %v961, %v966
        %v968 = vmax.f32 %v967, 0.0
        %v969 = vld [vmem:[#allocation10] sm:$0xff]
        %v970 = vld [vmem:[#allocation10 + $0x8] sm:$0xff]
        %v971 = vld [vmem:[#allocation10 + $0x10] sm:$0xff]
        %v972 = vld [vmem:[#allocation10 + $0x18] sm:$0xff]
        %v973 = vld [vmem:[#allocation10 + $0x20] sm:$0xff]
        %v974 = vld [vmem:[#allocation10 + $0x28] sm:$0xff]
        %v975 = vld [vmem:[#allocation10 + $0x30] sm:$0xff]
        %v976 = vld [vmem:[#allocation10 + $0x38] sm:$0xff]
        %v977 = vld [vmem:[#allocation10 + $0x40] sm:$0xff]
        %v978 = vld [vmem:[#allocation10 + $0x48] sm:$0xff]
        %v979 = vld [vmem:[#allocation10 + $0x50] sm:$0xff]
        %v980 = vld [vmem:[#allocation10 + $0x58] sm:$0xff]
        %v981 = vld [vmem:[#allocation10 + $0x60] sm:$0xff]
        %v982 = vld [vmem:[#allocation10 + $0x68] sm:$0xff]
        %v983 = vld [vmem:[#allocation10 + $0x70] sm:$0xff]
        %v984 = vld [vmem:[#allocation10 + $0x78] sm:$0xff]
        %985 = vmatprep.subr.mxu0 0.0
        %986 = vmatpush1.msra.mxu0 %v969
        %987 = vmatprep.subr.mxu0 0.0
        %988 = vmatpush1.msra.mxu0 %v970
        %989 = vmatprep.subr.mxu0 0.0
        %990 = vmatpush1.msra.mxu0 %v971
        %991 = vmatprep.subr.mxu0 0.0
        %992 = vmatpush1.msra.mxu0 %v972
        %993 = vmatprep.subr.mxu0 0.0
        %994 = vmatpush1.msra.mxu0 %v973
        %995 = vmatprep.subr.mxu0 0.0
        %996 = vmatpush1.msra.mxu0 %v974
        %997 = vmatprep.subr.mxu0 0.0
        %998 = vmatpush1.msra.mxu0 %v975
        %999 = vmatprep.subr.mxu0 0.0
        %1000 = vmatpush1.msra.mxu0 %v976
        %1001 = vmatprep.subr.mxu0 0.0
        %1002 = vmatpush1.msra.mxu0 %v977
        %1003 = vmatprep.subr.mxu0 0.0
        %1004 = vmatpush1.msra.mxu0 %v978
        %1005 = vmatprep.subr.mxu0 0.0
        %1006 = vmatpush1.msra.mxu0 %v979
        %1007 = vmatprep.subr.mxu0 0.0
        %1008 = vmatpush1.msra.mxu0 %v980
        %1009 = vmatprep.subr.mxu0 0.0
        %1010 = vmatpush1.msra.mxu0 %v981
        %1011 = vmatprep.subr.mxu0 0.0
        %1012 = vmatpush1.msra.mxu0 %v982
        %1013 = vmatprep.subr.mxu0 0.0
        %1014 = vmatpush1.msra.mxu0 %v983
        %1015 = vmatprep.subr.mxu0 0.0
        %1016 = vmatpush1.msra.mxu0 %v984
        %1017 = vmatprep.subr.mxu0 0.0
        %1018 = vmatpush1.msra.mxu0 0.0
        %1019 = vmatprep.subr.mxu0 0.0
        %1020 = vmatpush1.msra.mxu0 0.0
        %1021 = vmatprep.subr.mxu0 0.0
        %1022 = vmatpush1.msra.mxu0 0.0
        %1023 = vmatprep.subr.mxu0 0.0
        %1024 = vmatpush1.msra.mxu0 0.0
        %1025 = vmatprep.subr.mxu0 0.0
        %1026 = vmatpush1.msra.mxu0 0.0
        %1027 = vmatprep.subr.mxu0 0.0
        %1028 = vmatpush1.msra.mxu0 0.0
        %1029 = vmatprep.subr.mxu0 0.0
        %1030 = vmatpush1.msra.mxu0 0.0
        %1031 = vmatprep.subr.mxu0 0.0
        %1032 = vmatpush1.msra.mxu0 0.0
        %1033 = vmatprep.subr.mxu0 0.0
        %1034 = vmatpush1.msra.mxu0 0.0
        %1035 = vmatprep.subr.mxu0 0.0
        %1036 = vmatpush1.msra.mxu0 0.0
        %1037 = vmatprep.subr.mxu0 0.0
        %1038 = vmatpush1.msra.mxu0 0.0
        %1039 = vmatprep.subr.mxu0 0.0
        %1040 = vmatpush1.msra.mxu0 0.0
        %1041 = vmatprep.subr.mxu0 0.0
        %1042 = vmatpush1.msra.mxu0 0.0
        %1043 = vmatprep.subr.mxu0 0.0
        %1044 = vmatpush1.msra.mxu0 0.0
        %1045 = vmatprep.subr.mxu0 0.0
        %1046 = vmatpush1.msra.mxu0 0.0
        %1047 = vmatprep.subr.mxu0 0.0
        %1048 = vmatpush1.msra.mxu0 0.0
        %1049 = vmatprep.mubr.f32.mxu0 0.0
        %1050 = vmatmul.mubr.f32.gmra.mrb[0].mxu0 %v968
        %v1051 = vpop.f32.mrb[0].mxu0
        %v1052 = vadd.f32 0.0, %v1051
        %v1053 = vpop.f32.mrb[0].mxu0
        %1054 = vdwg.mxu0
        %v1055 = vld [vmem:[%s10] sm:$0x1]
        %v1056 = vlaneseq
        %v1057 = vshrl.u32 %v1056, 7
        %v1058 = vsub.s32 0, %v1057
        %v1059 = vrot.slane %v1055, %v1058
        %v1060 = vmul.f32 %v1052, %v1059
        %v1061 = vld [vmem:[%s10 + $0x1] sm:$0x1]
        %v1062 = vlaneseq
        %v1063 = vshrl.u32 %v1062, 7
        %v1064 = vsub.s32 0, %v1063
        %v1065 = vrot.slane %v1061, %v1064
        %v1066 = vadd.f32 %v1060, %v1065
        %v1067 = vmax.f32 %v1066, 0.0
        %v1068 = vld [vmem:[#allocation12] sm:$0xff]
        %v1069 = vld [vmem:[#allocation12 + $0x8] sm:$0xff]
        %v1070 = vld [vmem:[#allocation12 + $0x10] sm:$0xff]
        %v1071 = vld [vmem:[#allocation12 + $0x18] sm:$0xff]
        %v1072 = vld [vmem:[#allocation12 + $0x20] sm:$0xff]
        %v1073 = vld [vmem:[#allocation12 + $0x28] sm:$0xff]
        %v1074 = vld [vmem:[#allocation12 + $0x30] sm:$0xff]
        %v1075 = vld [vmem:[#allocation12 + $0x38] sm:$0xff]
        %v1076 = vld [vmem:[#allocation12 + $0x40] sm:$0xff]
        %v1077 = vld [vmem:[#allocation12 + $0x48] sm:$0xff]
        %v1078 = vld [vmem:[#allocation12 + $0x50] sm:$0xff]
        %v1079 = vld [vmem:[#allocation12 + $0x58] sm:$0xff]
        %v1080 = vld [vmem:[#allocation12 + $0x60] sm:$0xff]
        %v1081 = vld [vmem:[#allocation12 + $0x68] sm:$0xff]
        %v1082 = vld [vmem:[#allocation12 + $0x70] sm:$0xff]
        %v1083 = vld [vmem:[#allocation12 + $0x78] sm:$0xff]
        %1084 = vmatprep.subr.mxu0 0.0
        %1085 = vmatpush1.msra.mxu0 %v1068
        %1086 = vmatprep.subr.mxu0 0.0
        %1087 = vmatpush1.msra.mxu0 %v1069
        %1088 = vmatprep.subr.mxu0 0.0
        %1089 = vmatpush1.msra.mxu0 %v1070
        %1090 = vmatprep.subr.mxu0 0.0
        %1091 = vmatpush1.msra.mxu0 %v1071
        %1092 = vmatprep.subr.mxu0 0.0
        %1093 = vmatpush1.msra.mxu0 %v1072
        %1094 = vmatprep.subr.mxu0 0.0
        %1095 = vmatpush1.msra.mxu0 %v1073
        %1096 = vmatprep.subr.mxu0 0.0
        %1097 = vmatpush1.msra.mxu0 %v1074
        %1098 = vmatprep.subr.mxu0 0.0
        %1099 = vmatpush1.msra.mxu0 %v1075
        %1100 = vmatprep.subr.mxu0 0.0
        %1101 = vmatpush1.msra.mxu0 %v1076
        %1102 = vmatprep.subr.mxu0 0.0
        %1103 = vmatpush1.msra.mxu0 %v1077
        %1104 = vmatprep.subr.mxu0 0.0
        %1105 = vmatpush1.msra.mxu0 %v1078
        %1106 = vmatprep.subr.mxu0 0.0
        %1107 = vmatpush1.msra.mxu0 %v1079
        %1108 = vmatprep.subr.mxu0 0.0
        %1109 = vmatpush1.msra.mxu0 %v1080
        %1110 = vmatprep.subr.mxu0 0.0
        %1111 = vmatpush1.msra.mxu0 %v1081
        %1112 = vmatprep.subr.mxu0 0.0
        %1113 = vmatpush1.msra.mxu0 %v1082
        %1114 = vmatprep.subr.mxu0 0.0
        %1115 = vmatpush1.msra.mxu0 %v1083
        %1116 = vmatprep.subr.mxu0 0.0
        %1117 = vmatpush1.msra.mxu0 0.0
        %1118 = vmatprep.subr.mxu0 0.0
        %1119 = vmatpush1.msra.mxu0 0.0
        %1120 = vmatprep.subr.mxu0 0.0
        %1121 = vmatpush1.msra.mxu0 0.0
        %1122 = vmatprep.subr.mxu0 0.0
        %1123 = vmatpush1.msra.mxu0 0.0
        %1124 = vmatprep.subr.mxu0 0.0
        %1125 = vmatpush1.msra.mxu0 0.0
        %1126 = vmatprep.subr.mxu0 0.0
        %1127 = vmatpush1.msra.mxu0 0.0
        %1128 = vmatprep.subr.mxu0 0.0
        %1129 = vmatpush1.msra.mxu0 0.0
        %1130 = vmatprep.subr.mxu0 0.0
        %1131 = vmatpush1.msra.mxu0 0.0
        %1132 = vmatprep.subr.mxu0 0.0
        %1133 = vmatpush1.msra.mxu0 0.0
        %1134 = vmatprep.subr.mxu0 0.0
        %1135 = vmatpush1.msra.mxu0 0.0
        %1136 = vmatprep.subr.mxu0 0.0
        %1137 = vmatpush1.msra.mxu0 0.0
        %1138 = vmatprep.subr.mxu0 0.0
        %1139 = vmatpush1.msra.mxu0 0.0
        %1140 = vmatprep.subr.mxu0 0.0
        %1141 = vmatpush1.msra.mxu0 0.0
        %1142 = vmatprep.subr.mxu0 0.0
        %1143 = vmatpush1.msra.mxu0 0.0
        %1144 = vmatprep.subr.mxu0 0.0
        %1145 = vmatpush1.msra.mxu0 0.0
        %1146 = vmatprep.subr.mxu0 0.0
        %1147 = vmatpush1.msra.mxu0 0.0
        %1148 = vmatprep.mubr.f32.mxu0 0.0
        %1149 = vmatmul.mubr.f32.gmra.mrb[0].mxu0 %v1067
        %v1150 = vpop.f32.mrb[0].mxu0
        %v1151 = vadd.f32 0.0, %v1150
        %v1152 = vpop.f32.mrb[0].mxu0
        %1153 = vdwg.mxu0
        %v1154 = vld [vmem:[%s12] sm:$0x1]
        %v1155 = vlaneseq
        %v1156 = vshrl.u32 %v1155, 7
        %v1157 = vsub.s32 0, %v1156
        %v1158 = vrot.slane %v1154, %v1157
        %v1159 = vmul.f32 %v1151, %v1158
        %v1160 = vld [vmem:[%s12 + $0x1] sm:$0x1]
        %v1161 = vlaneseq
        %v1162 = vshrl.u32 %v1161, 7
        %v1163 = vsub.s32 0, %v1162
        %v1164 = vrot.slane %v1160, %v1163
        %v1165 = vadd.f32 %v1159, %v1164
        %v1166 = vmax.f32 %v1165, 0.0
        %v1167 = vld [vmem:[%s13] sm:$0xff]
        %v1168 = vld [vmem:[%s13 + $0x8] sm:$0xff]
        %v1169 = vld [vmem:[%s13 + $0x10] sm:$0xff]
        %v1170 = vld [vmem:[%s13 + $0x18] sm:$0xff]
        %v1171 = vld [vmem:[%s13 + $0x20] sm:$0xff]
        %v1172 = vld [vmem:[%s13 + $0x28] sm:$0xff]
        %v1173 = vld [vmem:[%s13 + $0x30] sm:$0xff]
        %v1174 = vld [vmem:[%s13 + $0x38] sm:$0xff]
        %v1175 = vld [vmem:[%s13 + $0x40] sm:$0xff]
        %v1176 = vld [vmem:[%s13 + $0x48] sm:$0xff]
        %v1177 = vld [vmem:[%s13 + $0x50] sm:$0xff]
        %v1178 = vld [vmem:[%s13 + $0x58] sm:$0xff]
        %v1179 = vld [vmem:[%s13 + $0x60] sm:$0xff]
        %v1180 = vld [vmem:[%s13 + $0x68] sm:$0xff]
        %v1181 = vld [vmem:[%s13 + $0x70] sm:$0xff]
        %v1182 = vld [vmem:[%s13 + $0x78] sm:$0xff]
        %1183 = vmatprep.subr.mxu0 0.0
        %1184 = vmatpush1.msra.mxu0 %v1167
        %1185 = vmatprep.subr.mxu0 0.0
        %1186 = vmatpush1.msra.mxu0 %v1168
        %1187 = vmatprep.subr.mxu0 0.0
        %1188 = vmatpush1.msra.mxu0 %v1169
        %1189 = vmatprep.subr.mxu0 0.0
        %1190 = vmatpush1.msra.mxu0 %v1170
        %1191 = vmatprep.subr.mxu0 0.0
        %1192 = vmatpush1.msra.mxu0 %v1171
        %1193 = vmatprep.subr.mxu0 0.0
        %1194 = vmatpush1.msra.mxu0 %v1172
        %1195 = vmatprep.subr.mxu0 0.0
        %1196 = vmatpush1.msra.mxu0 %v1173
        %1197 = vmatprep.subr.mxu0 0.0
        %1198 = vmatpush1.msra.mxu0 %v1174
        %1199 = vmatprep.subr.mxu0 0.0
        %1200 = vmatpush1.msra.mxu0 %v1175
        %1201 = vmatprep.subr.mxu0 0.0
        %1202 = vmatpush1.msra.mxu0 %v1176
        %1203 = vmatprep.subr.mxu0 0.0
        %1204 = vmatpush1.msra.mxu0 %v1177
        %1205 = vmatprep.subr.mxu0 0.0
        %1206 = vmatpush1.msra.mxu0 %v1178
        %1207 = vmatprep.subr.mxu0 0.0
        %1208 = vmatpush1.msra.mxu0 %v1179
        %1209 = vmatprep.subr.mxu0 0.0
        %1210 = vmatpush1.msra.mxu0 %v1180
        %1211 = vmatprep.subr.mxu0 0.0
        %1212 = vmatpush1.msra.mxu0 %v1181
        %1213 = vmatprep.subr.mxu0 0.0
        %1214 = vmatpush1.msra.mxu0 %v1182
        %1215 = vmatprep.subr.mxu0 0.0
        %1216 = vmatpush1.msra.mxu0 0.0
        %1217 = vmatprep.subr.mxu0 0.0
        %1218 = vmatpush1.msra.mxu0 0.0
        %1219 = vmatprep.subr.mxu0 0.0
        %1220 = vmatpush1.msra.mxu0 0.0
        %1221 = vmatprep.subr.mxu0 0.0
        %1222 = vmatpush1.msra.mxu0 0.0
        %1223 = vmatprep.subr.mxu0 0.0
        %1224 = vmatpush1.msra.mxu0 0.0
        %1225 = vmatprep.subr.mxu0 0.0
        %1226 = vmatpush1.msra.mxu0 0.0
        %1227 = vmatprep.subr.mxu0 0.0
        %1228 = vmatpush1.msra.mxu0 0.0
        %1229 = vmatprep.subr.mxu0 0.0
        %1230 = vmatpush1.msra.mxu0 0.0
        %1231 = vmatprep.subr.mxu0 0.0
        %1232 = vmatpush1.msra.mxu0 0.0
        %1233 = vmatprep.subr.mxu0 0.0
        %1234 = vmatpush1.msra.mxu0 0.0
        %1235 = vmatprep.subr.mxu0 0.0
        %1236 = vmatpush1.msra.mxu0 0.0
        %1237 = vmatprep.subr.mxu0 0.0
        %1238 = vmatpush1.msra.mxu0 0.0
        %1239 = vmatprep.subr.mxu0 0.0
        %1240 = vmatpush1.msra.mxu0 0.0
        %1241 = vmatprep.subr.mxu0 0.0
        %1242 = vmatpush1.msra.mxu0 0.0
        %1243 = vmatprep.subr.mxu0 0.0
        %1244 = vmatpush1.msra.mxu0 0.0
        %1245 = vmatprep.subr.mxu0 0.0
        %1246 = vmatpush1.msra.mxu0 0.0
        %1247 = vmatprep.mubr.f32.mxu0 0.0
        %1248 = vmatmul.mubr.f32.gmra.mrb[0].mxu0 %v1166
        %v1249 = vpop.f32.mrb[0].mxu0
        %v1250 = vadd.f32 0.0, %v1249
        %v1251 = vpop.f32.mrb[0].mxu0
        %1252 = vdwg.mxu0
        %v1253 = vld [vmem:[%s14] sm:$0x1]
        %v1254 = vlaneseq
        %v1255 = vshrl.u32 %v1254, 7
        %v1256 = vsub.s32 0, %v1255
        %v1257 = vrot.slane %v1253, %v1256
        %v1258 = vmul.f32 %v1250, %v1257
        %v1259 = vld [vmem:[%s14 + $0x1] sm:$0x1]
        %v1260 = vlaneseq
        %v1261 = vshrl.u32 %v1260, 7
        %v1262 = vsub.s32 0, %v1261
        %v1263 = vrot.slane %v1259, %v1262
        %v1264 = vadd.f32 %v1258, %v1263
        %v1265 = vsub.f32 0.0, %v1264
        %v1266 = vmul.f32 %v1265, 1.442695
        %v1267 = vpow.pop %v1266
        %v1268 = vadd.f32 %v1267, 1.0
        %v1269 = vrcp.pop %v1268
        %vm1270 = vcmask 64512
        %1271 = vst.msk [vmem:[%s607] sm:$0xff] %vm1270, %v1269
        %p1272 = scmp.lt.s32.totalorder %s32, 1
        %s1273 = scalar_select %p1272, %s32, 1
        %s1274 = smul.addr %s1273, 8
        %s1275 = scalar_lea.vmem %s15, %s1274
        // Predicated region
        $region109: #{tpu_custom_call.1} parent=79 // pred_check
          %p1276 = pneg %p375
        $region110: #{tpu_custom_call.1} parent=79 // pred_check_branch
          %1278 = sbr.rel (%p1276) target = $region112
        $region111: #{tpu_custom_call.1} parent=79 // pred_region
          _
        $region112: #{tpu_custom_call.1} parent=79 // pred_fallthru
          _
      $region80: #{tpu_custom_call.1} parent=5 // pred_fallthru
        _
      %p1279 = scmp.le.s32.totalorder 2, %s27
      // Predicated region
      $region113: #{tpu_custom_call.1} parent=5 // pred_check
        %p1280 = pneg %p1279
      $region114: #{tpu_custom_call.1} parent=5 // pred_check_branch
        %1282 = sbr.rel (%p1280) target = $region116
      $region115: #{tpu_custom_call.1} parent=5 // pred_region
        %s1283 = ssub.s32 %s27, 2
        // Predicated region
        $region117: #{tpu_custom_call.1} parent=115 // pred_check
          %p1284 = pneg %p381
        $region118: #{tpu_custom_call.1} parent=115 // pred_check_branch
          %1286 = sbr.rel (%p1284) target = $region120
        $region119: #{tpu_custom_call.1} parent=115 // pred_region
          %p1287 = scmp.lt.s32.totalorder %s33, 1
          %s1288 = scalar_select %p1287, %s33, 1
          %s1289 = smul.addr %s1288, 8
          %s1290 = scalar_lea.vmem %s15, %s1289
        $region120: #{tpu_custom_call.1} parent=115 // pred_fallthru
          _
      $region116: #{tpu_custom_call.1} parent=5 // pred_fallthru
        _
    $region6: #{tpu_custom_call.1} parent=1 // loop_footer
      %s31 = sadd.s32 1, %s27
    $region7: #{tpu_custom_call.1} parent=1 // loop_footer_branch
      %26 = sbr.rel target = $region3
    $region8: #{tpu_custom_call.1} parent=1 // loop_exit
      _
    %1291 = vsyncpa [#allocation3], 1
    %s1292 = scalar_lea.sflag [#allocation3], 1
    %1293 = vsyncpa %s1292, 1
    %1294 = vsyncpa [#allocation5], 1
    %1295 = vsyncpa [#allocation8], 1
    %1296 = vsyncpa [#allocation11], 1

</llo_original>
